<compile_context>
chip_gen: v7x
topology: tpu7x:2x2x1
jax: 0.10.0
libtpu: 0.0.40
codegen_flags: <defaults>
</compile_context>

<pallas_src>
import jax
import jax.numpy as jnp
from jax import lax
from jax.experimental import pallas as pl
from jax.experimental.pallas import tpu as pltpu


def _sumexp_kernel(z1_ref, z2t_ref, out_ref, acc_ref):
    """Accumulates denom_i = sum_j exp(sim_ij) for one (row, col) grid step."""
    j = pl.program_id(1)           # column tile -- "arbitrary" (innermost)
    nj = pl.num_programs(1)

    @pl.when(j == 0)
    def _():
        acc_ref[...] = jnp.zeros_like(acc_ref)

    # (tq, D) @ (D, tk) plain NN contraction on the MXU, f32 accumulation.
    sim = jnp.dot(z1_ref[...], z2t_ref[...],
                  preferred_element_type=jnp.float32)
    # Lane-wise accumulate (VPU); the cross-lane reduce is deferred to the
    # finalize step instead of running on the XLU every column step.
    acc_ref[...] += jnp.exp(sim)

    @pl.when(j == nj - 1)
    def _():
        out_ref[...] = jnp.sum(acc_ref[...], axis=1, keepdims=True)


def simclr_loss(z1, z2, temperature=0.5, *, tq=512, tk=256,
                matmul_dtype=jnp.bfloat16):
    """SimCLR NT-Xent loss matching the PyTorch module's forward().

    matmul_dtype=jnp.bfloat16 (default) uses the bf16-native MXU path with
    f32 accumulation; pass jnp.float32 to reproduce the reference numerics
    more tightly at lower throughput.
    """
    B, D = z1.shape
    assert z2.shape == (B, D)

    # ---- O(B*D) pre/post-processing in plain XLA ---------------------------
    z1 = z1.astype(jnp.float32)
    z2 = z2.astype(jnp.float32)
    inv_t = jnp.float32(1.0 / float(temperature))
    z1n = z1 * lax.rsqrt(jnp.maximum(jnp.sum(z1 * z1, axis=1, keepdims=True),
                                     jnp.float32(1e-24)))
    z2n = z2 * lax.rsqrt(jnp.maximum(jnp.sum(z2 * z2, axis=1, keepdims=True),
                                     jnp.float32(1e-24)))
    z1s = z1n * inv_t                              # fold 1/temperature into z1

    # Storage dtype for the kernel (bf16 by default). ssim / diag below use
    # the same rounded operands the kernel sees.
    z1k = z1s.astype(matmul_dtype)
    z2k = z2n.astype(matmul_dtype)
    z1k32 = z1k.astype(jnp.float32)
    z2k32 = z2k.astype(jnp.float32)

    # Row-sum and diagonal of sim are O(B*D); keep them out of the kernel so
    # the per-step kernel body is just matmul + exp + accumulate.
    ssim = z1k32 @ jnp.sum(z2k32, axis=0)          # (B,)  sum_j sim_ij
    diag = jnp.sum(z1k32 * z2k32, axis=1)          # (B,)  sim_ii

    # ---- pad so sim tiles are (8,128)-aligned / lane dense ------------------
    bp_r = ((B + tq - 1) // tq) * tq
    bp_c = ((B + tk - 1) // tk) * tk
    z1p = jnp.pad(z1k, ((0, bp_r - B), (0, 0)))            # (bp_r, D)
    z2tp = jnp.pad(z2k.T, ((0, 0), (0, bp_c - B)))         # (D, bp_c)
    gi, gj = bp_r // tq, bp_c // tk

    grid_spec = pltpu.PrefetchScalarGridSpec(
        num_scalar_prefetch=0,
        grid=(gi, gj),
        in_specs=[
            pl.BlockSpec((tq, D), lambda i, j: (i, 0)),    # z1 row tile
            pl.BlockSpec((D, tk), lambda i, j: (0, j)),    # z2^T column tile
        ],
        out_specs=pl.BlockSpec((tq, 1), lambda i, j: (i, 0)),
        scratch_shapes=[pltpu.VMEM((tq, tk), jnp.float32)],  # exp(sim) accum
    )

    sexp = pl.pallas_call(
        _sumexp_kernel,
        out_shape=jax.ShapeDtypeStruct((bp_r, 1), jnp.float32),
        grid_spec=grid_spec,
        compiler_params=pltpu.CompilerParams(
            dimension_semantics=("parallel", "arbitrary")),
    )(z1p, z2tp)

    # Padded z2 columns are exact zero rows -> sim == 0 -> exp == 1 each, so
    # they add exactly (bp_c - B) to every valid row's denominator.  Padded
    # query rows are simply discarded.
    denom = sexp[:B, 0] - jnp.float32(bp_c - B)

    #   loss = sum_i sum_{j!=i} [log(denom_i) - sim_ij] / (B - 1)
    #        = sum_i [(B-1)*log(denom_i) - ssim_i + diag_i] / (B - 1)
    row_loss = jnp.float32(B - 1) * jnp.log(denom) - ssim + diag
    return jnp.sum(row_loss) / jnp.float32(B - 1)


def _reference(z1, z2, temperature=0.5):
    # Pure-JAX f32 mirror of the PyTorch module, for a sanity check.
    z1n = z1 / jnp.maximum(jnp.linalg.norm(z1, axis=1, keepdims=True), 1e-12)
    z2n = z2 / jnp.maximum(jnp.linalg.norm(z2, axis=1, keepdims=True), 1e-12)
    sim = (z1n @ z2n.T) / temperature
    e = jnp.exp(sim)
    loss = -jnp.log(e / e.sum(1, keepdims=True))
    mask = jnp.eye(sim.shape[0], dtype=sim.dtype)
    loss = loss * (1.0 - mask)
    return loss.sum() / (sim.shape[0] - 1)


if __name__ == "__main__":
    key = jax.random.PRNGKey(0)
    k1, k2, k3, k4, k5, k6 = jax.random.split(key, 6)

    # Small shapes consistent with the module: batch=8, hidden=32.
    B, D = 8, 32
    z1 = jax.random.normal(k1, (B, D), dtype=jnp.float32)
    z2 = jax.random.normal(k2, (B, D), dtype=jnp.float32)

    loss = jax.block_until_ready(simclr_loss(z1, z2, temperature=0.5))
    ref = _reference(z1, z2, temperature=0.5)
    assert jnp.allclose(loss, ref, rtol=2e-2, atol=2e-2), (loss, ref)

    # Batch-padding path (bf16 default).
    B2, D2 = 200, 64
    a = jax.random.normal(k3, (B2, D2), dtype=jnp.float32)
    b = jax.random.normal(k4, (B2, D2), dtype=jnp.float32)
    loss2 = jax.block_until_ready(simclr_loss(a, b, temperature=0.5))
    ref2 = _reference(a, b, temperature=0.5)
    assert jnp.allclose(loss2, ref2, rtol=2e-2, atol=2e-2), (loss2, ref2)

    # Multi-tile grid path (gi > 1, gj > 1) + f32 numerics check.
    B3, D3 = 600, 64
    c = jax.random.normal(k5, (B3, D3), dtype=jnp.float32)
    d = jax.random.normal(k6, (B3, D3), dtype=jnp.float32)
    loss3 = jax.block_until_ready(
        simclr_loss(c, d, temperature=0.5, matmul_dtype=jnp.float32))
    ref3 = _reference(c, d, temperature=0.5)
    assert jnp.allclose(loss3, ref3, rtol=1e-3, atol=1e-3), (loss3, ref3)

    print("KERNEL_OK")
</pallas_src>

<mosaic_0001>
module attributes {stable_mosaic.version = 11 : i64} {
  func.func @_sumexp_kernel(%arg0: i32, %arg1: i32, %arg2: memref<512x32xbf16, #tpu.memory_space<vmem>>, %arg3: memref<32x256xbf16, #tpu.memory_space<vmem>>, %arg4: memref<512x1xf32, #tpu.memory_space<vmem>>, %arg5: memref<512x256xf32, #tpu.memory_space<vmem>>) attributes {dimension_semantics = [#tpu.dimension_semantics<parallel>, #tpu.dimension_semantics<arbitrary>], iteration_bounds = array<i64: 1, 1>, scalar_prefetch = 0 : i64, scratch_operands = 1 : i64, tpu.core_type = #tpu.core_type<tc>, window_params = [{transform_indices = @transform_0, window_bounds = array<i64: 512, 32>}, {transform_indices = @transform_1, window_bounds = array<i64: 32, 256>}, {transform_indices = @transform_2, window_bounds = array<i64: 512, 1>}]} {
    %c0_i32 = arith.constant 0 : i32
    %0 = arith.cmpi eq, %arg1, %c0_i32 : i32
    %1 = arith.extui %0 : i1 to i32
    %c0_i32_0 = arith.constant 0 : i32
    %2 = arith.cmpi ne, %1, %c0_i32_0 : i32
    scf.if %2 {
      %cst_10 = arith.constant 0.000000e+00 : f32
      %13 = vector.broadcast %cst_10 : f32 to vector<512x256xf32>
      %c0_11 = arith.constant 0 : index
      %c0_12 = arith.constant 0 : index
      %14 = vector.load %arg5[%c0_11, %c0_12] : memref<512x256xf32, #tpu.memory_space<vmem>>, vector<512x256xf32>
      tpu.vector_store %arg5[%c0_11, %c0_12], %13 {strides = array<i32>} : memref<512x256xf32, #tpu.memory_space<vmem>>, vector<512x256xf32>,
    } else {
    }
    %c0 = arith.constant 0 : index
    %c0_1 = arith.constant 0 : index
    %3 = vector.load %arg2[%c0, %c0_1] : memref<512x32xbf16, #tpu.memory_space<vmem>>, vector<512x32xbf16>
    %c0_2 = arith.constant 0 : index
    %c0_3 = arith.constant 0 : index
    %4 = vector.load %arg3[%c0_2, %c0_3] : memref<32x256xbf16, #tpu.memory_space<vmem>>, vector<32x256xbf16>
    %cst = arith.constant dense<0.000000e+00> : vector<512x256xf32>
    %5 = tpu.matmul %3, %4, %cst {dimension_numbers = #tpu.dot_dimension_numbers<[1], [0], [0], [1], [0, 0, 1, 1], [], []>} : vector<512x32xbf16>, vector<32x256xbf16>, vector<512x256xf32> -> vector<512x256xf32>
    %c0_4 = arith.constant 0 : index
    %c0_5 = arith.constant 0 : index
    %6 = vector.load %arg5[%c0_4, %c0_5] : memref<512x256xf32, #tpu.memory_space<vmem>>, vector<512x256xf32>
    %7 = math.exp %5 : vector<512x256xf32>
    %8 = arith.addf %6, %7 : vector<512x256xf32>
    %c0_6 = arith.constant 0 : index
    %c0_7 = arith.constant 0 : index
    %9 = vector.load %arg5[%c0_6, %c0_7] : memref<512x256xf32, #tpu.memory_space<vmem>>, vector<512x256xf32>
    tpu.vector_store %arg5[%c0_6, %c0_7], %8 {strides = array<i32>} : memref<512x256xf32, #tpu.memory_space<vmem>>, vector<512x256xf32>,
    %c0_i32_8 = arith.constant 0 : i32
    %10 = arith.cmpi eq, %arg1, %c0_i32_8 : i32
    %11 = arith.extui %10 : i1 to i32
    %c0_i32_9 = arith.constant 0 : i32
    %12 = arith.cmpi ne, %11, %c0_i32_9 : i32
    scf.if %12 {
      %c0_10 = arith.constant 0 : index
      %c0_11 = arith.constant 0 : index
      %13 = vector.load %arg5[%c0_10, %c0_11] : memref<512x256xf32, #tpu.memory_space<vmem>>, vector<512x256xf32>
      %cst_12 = arith.constant dense<0.000000e+00> : vector<512xf32>
      %14 = vector.multi_reduction <add>, %13, %cst_12 [1] : vector<512x256xf32> to vector<512xf32>
      %15 = vector.shape_cast %14 : vector<512xf32> to vector<512x1xf32>
      %c0_13 = arith.constant 0 : index
      %c0_14 = arith.constant 0 : index
      %16 = vector.load %arg4[%c0_13, %c0_14] : memref<512x1xf32, #tpu.memory_space<vmem>>, vector<512x1xf32>
      tpu.vector_store %arg4[%c0_13, %c0_14], %15 {strides = array<i32>} : memref<512x1xf32, #tpu.memory_space<vmem>>, vector<512x1xf32>,
    } else {
    }
    return
  }
  func.func @transform_0(%arg0: i32, %arg1: i32) -> (i32, i32) {
    %c0_i32 = arith.constant 0 : i32
    %c0_i32_0 = arith.constant 0 : i32
    return %arg0, %c0_i32 : i32, i32
  }
  func.func @transform_1(%arg0: i32, %arg1: i32) -> (i32, i32) {
    %c0_i32 = arith.constant 0 : i32
    %c0_i32_0 = arith.constant 0 : i32
    return %c0_i32, %arg1 : i32, i32
  }
  func.func @transform_2(%arg0: i32, %arg1: i32) -> (i32, i32) {
    %c0_i32 = arith.constant 0 : i32
    %c0_i32_0 = arith.constant 0 : i32
    return %arg0, %c0_i32 : i32, i32
  }
}

</mosaic_0001>

<llo_original>
// kernel: tpu_custom_call.1
$region0: #{tpu_custom_call.1}
  #allocation0 [shape = 'u32[]', space=smem, size = 0x4, offset = 0x4, fixed_abs, tag = 'smem constant byte address 0x4 - core index']
  #allocation1 [shape = 'u32[144,128]{1,0:T(1,128)}', space=vmem, size = 0x12000, scoped, tag = 'internal scratch']
  #allocation2 [shape = 'f32[512,256]{1,0:T(8,128)}', space=vmem, size = 0x80000, scoped, tag = 'scratch operand']
  %s0 = inlined_call_operand.vmem [shape: bf16[512,32], index: 0, kind: input, shape index: {}]
  %s1 = inlined_call_operand.vmem [shape: bf16[32,256], index: 1, kind: input, shape index: {}]
  %s2 = inlined_call_operand.vmem [shape: f32[512,1], index: 2, kind: output, shape index: {}]
  %s3 = sld [smem:[#allocation0]]
  $region26: #{tpu_custom_call.1} parent=0
    _
  %s5 = ssub.s32 1, %s3
  %s6 = scalar_select 0, %s5, %s3
  // Predicated region
  $region2: #{tpu_custom_call.1} parent=0 // pred_check
    _
  $region3: #{tpu_custom_call.1} parent=0 // pred_check_branch
    %8 = sbr.rel (0) target = $region5
  $region4: #{tpu_custom_call.1} parent=0 // pred_region
    _
  $region5: #{tpu_custom_call.1} parent=0 // pred_fallthru
    _
  // Predicated region
  $region6: #{tpu_custom_call.1} parent=0 // pred_check
    _
  $region7: #{tpu_custom_call.1} parent=0 // pred_check_branch
    %10 = sbr.rel (0) target = $region9
  $region8: #{tpu_custom_call.1} parent=0 // pred_region
    _
  $region9: #{tpu_custom_call.1} parent=0 // pred_fallthru
    _
  %p12 = scmp.eq.s32.totalorder 0, 0
  // Predicated region
  $region10: #{tpu_custom_call.1} parent=0 // pred_check
    %p13 = pneg %p12
  $region11: #{tpu_custom_call.1} parent=0 // pred_check_branch
    %15 = sbr.rel (%p13) target = $region13
  $region12: #{tpu_custom_call.1} parent=0 // pred_region
    %16 = vst [vmem:[#allocation2] sm:$0xff] 0.0
    %17 = vst [vmem:[#allocation2 + $0x8] sm:$0xff] 0.0
    %18 = vst [vmem:[#allocation2 + $0x10] sm:$0xff] 0.0
    %19 = vst [vmem:[#allocation2 + $0x18] sm:$0xff] 0.0
    %20 = vst [vmem:[#allocation2 + $0x20] sm:$0xff] 0.0
    %21 = vst [vmem:[#allocation2 + $0x28] sm:$0xff] 0.0
    %22 = vst [vmem:[#allocation2 + $0x30] sm:$0xff] 0.0
    %23 = vst [vmem:[#allocation2 + $0x38] sm:$0xff] 0.0
    %24 = vst [vmem:[#allocation2 + $0x40] sm:$0xff] 0.0
    %25 = vst [vmem:[#allocation2 + $0x48] sm:$0xff] 0.0
    %26 = vst [vmem:[#allocation2 + $0x50] sm:$0xff] 0.0
    %27 = vst [vmem:[#allocation2 + $0x58] sm:$0xff] 0.0
    %28 = vst [vmem:[#allocation2 + $0x60] sm:$0xff] 0.0
    %29 = vst [vmem:[#allocation2 + $0x68] sm:$0xff] 0.0
    %30 = vst [vmem:[#allocation2 + $0x70] sm:$0xff] 0.0
    %31 = vst [vmem:[#allocation2 + $0x78] sm:$0xff] 0.0
    %32 = vst [vmem:[#allocation2 + $0x80] sm:$0xff] 0.0
    %33 = vst [vmem:[#allocation2 + $0x88] sm:$0xff] 0.0
    %34 = vst [vmem:[#allocation2 + $0x90] sm:$0xff] 0.0
    %35 = vst [vmem:[#allocation2 + $0x98] sm:$0xff] 0.0
    %36 = vst [vmem:[#allocation2 + $0xa0] sm:$0xff] 0.0
    %37 = vst [vmem:[#allocation2 + $0xa8] sm:$0xff] 0.0
    %38 = vst [vmem:[#allocation2 + $0xb0] sm:$0xff] 0.0
    %39 = vst [vmem:[#allocation2 + $0xb8] sm:$0xff] 0.0
    %40 = vst [vmem:[#allocation2 + $0xc0] sm:$0xff] 0.0
    %41 = vst [vmem:[#allocation2 + $0xc8] sm:$0xff] 0.0
    %42 = vst [vmem:[#allocation2 + $0xd0] sm:$0xff] 0.0
    %43 = vst [vmem:[#allocation2 + $0xd8] sm:$0xff] 0.0
    %44 = vst [vmem:[#allocation2 + $0xe0] sm:$0xff] 0.0
    %45 = vst [vmem:[#allocation2 + $0xe8] sm:$0xff] 0.0
    %46 = vst [vmem:[#allocation2 + $0xf0] sm:$0xff] 0.0
    %47 = vst [vmem:[#allocation2 + $0xf8] sm:$0xff] 0.0
    %48 = vst [vmem:[#allocation2 + $0x100] sm:$0xff] 0.0
    %49 = vst [vmem:[#allocation2 + $0x108] sm:$0xff] 0.0
    %50 = vst [vmem:[#allocation2 + $0x110] sm:$0xff] 0.0
    %51 = vst [vmem:[#allocation2 + $0x118] sm:$0xff] 0.0
    %52 = vst [vmem:[#allocation2 + $0x120] sm:$0xff] 0.0
    %53 = vst [vmem:[#allocation2 + $0x128] sm:$0xff] 0.0
    %54 = vst [vmem:[#allocation2 + $0x130] sm:$0xff] 0.0
    %55 = vst [vmem:[#allocation2 + $0x138] sm:$0xff] 0.0
    %56 = vst [vmem:[#allocation2 + $0x140] sm:$0xff] 0.0
    %57 = vst [vmem:[#allocation2 + $0x148] sm:$0xff] 0.0
    %58 = vst [vmem:[#allocation2 + $0x150] sm:$0xff] 0.0
    %59 = vst [vmem:[#allocation2 + $0x158] sm:$0xff] 0.0
    %60 = vst [vmem:[#allocation2 + $0x160] sm:$0xff] 0.0
    %61 = vst [vmem:[#allocation2 + $0x168] sm:$0xff] 0.0
    %62 = vst [vmem:[#allocation2 + $0x170] sm:$0xff] 0.0
    %63 = vst [vmem:[#allocation2 + $0x178] sm:$0xff] 0.0
    %64 = vst [vmem:[#allocation2 + $0x180] sm:$0xff] 0.0
    %65 = vst [vmem:[#allocation2 + $0x188] sm:$0xff] 0.0
    %66 = vst [vmem:[#allocation2 + $0x190] sm:$0xff] 0.0
    %67 = vst [vmem:[#allocation2 + $0x198] sm:$0xff] 0.0
    %68 = vst [vmem:[#allocation2 + $0x1a0] sm:$0xff] 0.0
    %69 = vst [vmem:[#allocation2 + $0x1a8] sm:$0xff] 0.0
    %70 = vst [vmem:[#allocation2 + $0x1b0] sm:$0xff] 0.0
    %71 = vst [vmem:[#allocation2 + $0x1b8] sm:$0xff] 0.0
    %72 = vst [vmem:[#allocation2 + $0x1c0] sm:$0xff] 0.0
    %73 = vst [vmem:[#allocation2 + $0x1c8] sm:$0xff] 0.0
    %74 = vst [vmem:[#allocation2 + $0x1d0] sm:$0xff] 0.0
    %75 = vst [vmem:[#allocation2 + $0x1d8] sm:$0xff] 0.0
    %76 = vst [vmem:[#allocation2 + $0x1e0] sm:$0xff] 0.0
    %77 = vst [vmem:[#allocation2 + $0x1e8] sm:$0xff] 0.0
    %78 = vst [vmem:[#allocation2 + $0x1f0] sm:$0xff] 0.0
    %79 = vst [vmem:[#allocation2 + $0x1f8] sm:$0xff] 0.0
    %80 = vst [vmem:[#allocation2 + $0x200] sm:$0xff] 0.0
    %81 = vst [vmem:[#allocation2 + $0x208] sm:$0xff] 0.0
    %82 = vst [vmem:[#allocation2 + $0x210] sm:$0xff] 0.0
    %83 = vst [vmem:[#allocation2 + $0x218] sm:$0xff] 0.0
    %84 = vst [vmem:[#allocation2 + $0x220] sm:$0xff] 0.0
    %85 = vst [vmem:[#allocation2 + $0x228] sm:$0xff] 0.0
    %86 = vst [vmem:[#allocation2 + $0x230] sm:$0xff] 0.0
    %87 = vst [vmem:[#allocation2 + $0x238] sm:$0xff] 0.0
    %88 = vst [vmem:[#allocation2 + $0x240] sm:$0xff] 0.0
    %89 = vst [vmem:[#allocation2 + $0x248] sm:$0xff] 0.0
    %90 = vst [vmem:[#allocation2 + $0x250] sm:$0xff] 0.0
    %91 = vst [vmem:[#allocation2 + $0x258] sm:$0xff] 0.0
    %92 = vst [vmem:[#allocation2 + $0x260] sm:$0xff] 0.0
    %93 = vst [vmem:[#allocation2 + $0x268] sm:$0xff] 0.0
    %94 = vst [vmem:[#allocation2 + $0x270] sm:$0xff] 0.0
    %95 = vst [vmem:[#allocation2 + $0x278] sm:$0xff] 0.0
    %96 = vst [vmem:[#allocation2 + $0x280] sm:$0xff] 0.0
    %97 = vst [vmem:[#allocation2 + $0x288] sm:$0xff] 0.0
    %98 = vst [vmem:[#allocation2 + $0x290] sm:$0xff] 0.0
    %99 = vst [vmem:[#allocation2 + $0x298] sm:$0xff] 0.0
    %100 = vst [vmem:[#allocation2 + $0x2a0] sm:$0xff] 0.0
    %101 = vst [vmem:[#allocation2 + $0x2a8] sm:$0xff] 0.0
    %102 = vst [vmem:[#allocation2 + $0x2b0] sm:$0xff] 0.0
    %103 = vst [vmem:[#allocation2 + $0x2b8] sm:$0xff] 0.0
    %104 = vst [vmem:[#allocation2 + $0x2c0] sm:$0xff] 0.0
    %105 = vst [vmem:[#allocation2 + $0x2c8] sm:$0xff] 0.0
    %106 = vst [vmem:[#allocation2 + $0x2d0] sm:$0xff] 0.0
    %107 = vst [vmem:[#allocation2 + $0x2d8] sm:$0xff] 0.0
    %108 = vst [vmem:[#allocation2 + $0x2e0] sm:$0xff] 0.0
    %109 = vst [vmem:[#allocation2 + $0x2e8] sm:$0xff] 0.0
    %110 = vst [vmem:[#allocation2 + $0x2f0] sm:$0xff] 0.0
    %111 = vst [vmem:[#allocation2 + $0x2f8] sm:$0xff] 0.0
    %112 = vst [vmem:[#allocation2 + $0x300] sm:$0xff] 0.0
    %113 = vst [vmem:[#allocation2 + $0x308] sm:$0xff] 0.0
    %114 = vst [vmem:[#allocation2 + $0x310] sm:$0xff] 0.0
    %115 = vst [vmem:[#allocation2 + $0x318] sm:$0xff] 0.0
    %116 = vst [vmem:[#allocation2 + $0x320] sm:$0xff] 0.0
    %117 = vst [vmem:[#allocation2 + $0x328] sm:$0xff] 0.0
    %118 = vst [vmem:[#allocation2 + $0x330] sm:$0xff] 0.0
    %119 = vst [vmem:[#allocation2 + $0x338] sm:$0xff] 0.0
    %120 = vst [vmem:[#allocation2 + $0x340] sm:$0xff] 0.0
    %121 = vst [vmem:[#allocation2 + $0x348] sm:$0xff] 0.0
    %122 = vst [vmem:[#allocation2 + $0x350] sm:$0xff] 0.0
    %123 = vst [vmem:[#allocation2 + $0x358] sm:$0xff] 0.0
    %124 = vst [vmem:[#allocation2 + $0x360] sm:$0xff] 0.0
    %125 = vst [vmem:[#allocation2 + $0x368] sm:$0xff] 0.0
    %126 = vst [vmem:[#allocation2 + $0x370] sm:$0xff] 0.0
    %127 = vst [vmem:[#allocation2 + $0x378] sm:$0xff] 0.0
    %128 = vst [vmem:[#allocation2 + $0x380] sm:$0xff] 0.0
    %129 = vst [vmem:[#allocation2 + $0x388] sm:$0xff] 0.0
    %130 = vst [vmem:[#allocation2 + $0x390] sm:$0xff] 0.0
    %131 = vst [vmem:[#allocation2 + $0x398] sm:$0xff] 0.0
    %132 = vst [vmem:[#allocation2 + $0x3a0] sm:$0xff] 0.0
    %133 = vst [vmem:[#allocation2 + $0x3a8] sm:$0xff] 0.0
    %134 = vst [vmem:[#allocation2 + $0x3b0] sm:$0xff] 0.0
    %135 = vst [vmem:[#allocation2 + $0x3b8] sm:$0xff] 0.0
    %136 = vst [vmem:[#allocation2 + $0x3c0] sm:$0xff] 0.0
    %137 = vst [vmem:[#allocation2 + $0x3c8] sm:$0xff] 0.0
    %138 = vst [vmem:[#allocation2 + $0x3d0] sm:$0xff] 0.0
    %139 = vst [vmem:[#allocation2 + $0x3d8] sm:$0xff] 0.0
    %140 = vst [vmem:[#allocation2 + $0x3e0] sm:$0xff] 0.0
    %141 = vst [vmem:[#allocation2 + $0x3e8] sm:$0xff] 0.0
    %142 = vst [vmem:[#allocation2 + $0x3f0] sm:$0xff] 0.0
    %143 = vst [vmem:[#allocation2 + $0x3f8] sm:$0xff] 0.0
  $region13: #{tpu_custom_call.1} parent=0 // pred_fallthru
    _
  %v144 = vld [vmem:[%s0] sm:$0xf]
  %v145 = vld [vmem:[%s0 + $0x4] sm:$0xf]
  %v146 = vld [vmem:[%s0 + $0x8] sm:$0xf]
  %v147 = vld [vmem:[%s0 + $0xc] sm:$0xf]
  %v148 = vld [vmem:[%s0 + $0x10] sm:$0xf]
  %v149 = vld [vmem:[%s0 + $0x14] sm:$0xf]
  %v150 = vld [vmem:[%s0 + $0x18] sm:$0xf]
  %v151 = vld [vmem:[%s0 + $0x1c] sm:$0xf]
  %v152 = vld [vmem:[%s0 + $0x20] sm:$0xf]
  %v153 = vld [vmem:[%s0 + $0x24] sm:$0xf]
  %v154 = vld [vmem:[%s0 + $0x28] sm:$0xf]
  %v155 = vld [vmem:[%s0 + $0x2c] sm:$0xf]
  %v156 = vld [vmem:[%s0 + $0x30] sm:$0xf]
  %v157 = vld [vmem:[%s0 + $0x34] sm:$0xf]
  %v158 = vld [vmem:[%s0 + $0x38] sm:$0xf]
  %v159 = vld [vmem:[%s0 + $0x3c] sm:$0xf]
  %v160 = vld [vmem:[%s0 + $0x40] sm:$0xf]
  %v161 = vld [vmem:[%s0 + $0x44] sm:$0xf]
  %v162 = vld [vmem:[%s0 + $0x48] sm:$0xf]
  %v163 = vld [vmem:[%s0 + $0x4c] sm:$0xf]
  %v164 = vld [vmem:[%s0 + $0x50] sm:$0xf]
  %v165 = vld [vmem:[%s0 + $0x54] sm:$0xf]
  %v166 = vld [vmem:[%s0 + $0x58] sm:$0xf]
  %v167 = vld [vmem:[%s0 + $0x5c] sm:$0xf]
  %v168 = vld [vmem:[%s0 + $0x60] sm:$0xf]
  %v169 = vld [vmem:[%s0 + $0x64] sm:$0xf]
  %v170 = vld [vmem:[%s0 + $0x68] sm:$0xf]
  %v171 = vld [vmem:[%s0 + $0x6c] sm:$0xf]
  %v172 = vld [vmem:[%s0 + $0x70] sm:$0xf]
  %v173 = vld [vmem:[%s0 + $0x74] sm:$0xf]
  %v174 = vld [vmem:[%s0 + $0x78] sm:$0xf]
  %v175 = vld [vmem:[%s0 + $0x7c] sm:$0xf]
  %v176 = vld [vmem:[%s0 + $0x80] sm:$0xf]
  %v177 = vld [vmem:[%s0 + $0x84] sm:$0xf]
  %v178 = vld [vmem:[%s0 + $0x88] sm:$0xf]
  %v179 = vld [vmem:[%s0 + $0x8c] sm:$0xf]
  %v180 = vld [vmem:[%s0 + $0x90] sm:$0xf]
  %v181 = vld [vmem:[%s0 + $0x94] sm:$0xf]
  %v182 = vld [vmem:[%s0 + $0x98] sm:$0xf]
  %v183 = vld [vmem:[%s0 + $0x9c] sm:$0xf]
  %v184 = vld [vmem:[%s0 + $0xa0] sm:$0xf]
  %v185 = vld [vmem:[%s0 + $0xa4] sm:$0xf]
  %v186 = vld [vmem:[%s0 + $0xa8] sm:$0xf]
  %v187 = vld [vmem:[%s0 + $0xac] sm:$0xf]
  %v188 = vld [vmem:[%s0 + $0xb0] sm:$0xf]
  %v189 = vld [vmem:[%s0 + $0xb4] sm:$0xf]
  %v190 = vld [vmem:[%s0 + $0xb8] sm:$0xf]
  %v191 = vld [vmem:[%s0 + $0xbc] sm:$0xf]
  %v192 = vld [vmem:[%s0 + $0xc0] sm:$0xf]
  %v193 = vld [vmem:[%s0 + $0xc4] sm:$0xf]
  %v194 = vld [vmem:[%s0 + $0xc8] sm:$0xf]
  %v195 = vld [vmem:[%s0 + $0xcc] sm:$0xf]
  %v196 = vld [vmem:[%s0 + $0xd0] sm:$0xf]
  %v197 = vld [vmem:[%s0 + $0xd4] sm:$0xf]
  %v198 = vld [vmem:[%s0 + $0xd8] sm:$0xf]
  %v199 = vld [vmem:[%s0 + $0xdc] sm:$0xf]
  %v200 = vld [vmem:[%s0 + $0xe0] sm:$0xf]
  %v201 = vld [vmem:[%s0 + $0xe4] sm:$0xf]
  %v202 = vld [vmem:[%s0 + $0xe8] sm:$0xf]
  %v203 = vld [vmem:[%s0 + $0xec] sm:$0xf]
  %v204 = vld [vmem:[%s0 + $0xf0] sm:$0xf]
  %v205 = vld [vmem:[%s0 + $0xf4] sm:$0xf]
  %v206 = vld [vmem:[%s0 + $0xf8] sm:$0xf]
  %v207 = vld [vmem:[%s0 + $0xfc] sm:$0xf]
  %v208 = vld [vmem:[%s1] sm:$0xff]
  %v209 = vld [vmem:[%s1 + $0x8] sm:$0xff]
  %v210 = vld [vmem:[%s1 + $0x10] sm:$0xff]
  %v211 = vld [vmem:[%s1 + $0x18] sm:$0xff]
  %v276 = vunpack.c.l.b16 %v144
  %v277 = vunpack.c.l.b16 %v145
  %v278 = vunpack.c.l.b16 %v146
  %v279 = vunpack.c.l.b16 %v147
  %v280 = vunpack.c.l.b16 %v148
  %v281 = vunpack.c.l.b16 %v149
  %v282 = vunpack.c.l.b16 %v150
  %v283 = vunpack.c.l.b16 %v151
  %v284 = vunpack.c.l.b16 %v152
  %v285 = vunpack.c.l.b16 %v153
  %v286 = vunpack.c.l.b16 %v154
  %v287 = vunpack.c.l.b16 %v155
  %v288 = vunpack.c.l.b16 %v156
  %v289 = vunpack.c.l.b16 %v157
  %v290 = vunpack.c.l.b16 %v158
  %v291 = vunpack.c.l.b16 %v159
  %v292 = vunpack.c.l.b16 %v160
  %v293 = vunpack.c.l.b16 %v161
  %v294 = vunpack.c.l.b16 %v162
  %v295 = vunpack.c.l.b16 %v163
  %v296 = vunpack.c.l.b16 %v164
  %v297 = vunpack.c.l.b16 %v165
  %v298 = vunpack.c.l.b16 %v166
  %v299 = vunpack.c.l.b16 %v167
  %v300 = vunpack.c.l.b16 %v168
  %v301 = vunpack.c.l.b16 %v169
  %v302 = vunpack.c.l.b16 %v170
  %v303 = vunpack.c.l.b16 %v171
  %v304 = vunpack.c.l.b16 %v172
  %v305 = vunpack.c.l.b16 %v173
  %v306 = vunpack.c.l.b16 %v174
  %v307 = vunpack.c.l.b16 %v175
  %v308 = vunpack.c.l.b16 %v176
  %v309 = vunpack.c.l.b16 %v177
  %v310 = vunpack.c.l.b16 %v178
  %v311 = vunpack.c.l.b16 %v179
  %v312 = vunpack.c.l.b16 %v180
  %v313 = vunpack.c.l.b16 %v181
  %v314 = vunpack.c.l.b16 %v182
  %v315 = vunpack.c.l.b16 %v183
  %v316 = vunpack.c.l.b16 %v184
  %v317 = vunpack.c.l.b16 %v185
  %v318 = vunpack.c.l.b16 %v186
  %v319 = vunpack.c.l.b16 %v187
  %v320 = vunpack.c.l.b16 %v188
  %v321 = vunpack.c.l.b16 %v189
  %v322 = vunpack.c.l.b16 %v190
  %v323 = vunpack.c.l.b16 %v191
  %v324 = vunpack.c.l.b16 %v192
  %v325 = vunpack.c.l.b16 %v193
  %v326 = vunpack.c.l.b16 %v194
  %v327 = vunpack.c.l.b16 %v195
  %v328 = vunpack.c.l.b16 %v196
  %v329 = vunpack.c.l.b16 %v197
  %v330 = vunpack.c.l.b16 %v198
  %v331 = vunpack.c.l.b16 %v199
  %v332 = vunpack.c.l.b16 %v200
  %v333 = vunpack.c.l.b16 %v201
  %v334 = vunpack.c.l.b16 %v202
  %v335 = vunpack.c.l.b16 %v203
  %v336 = vunpack.c.l.b16 %v204
  %v337 = vunpack.c.l.b16 %v205
  %v338 = vunpack.c.l.b16 %v206
  %v339 = vunpack.c.l.b16 %v207
  %v340 = vpack.c.b16 %v277, %v276
  %v341 = vpack.c.b16 %v279, %v278
  %v342 = vpack.c.b16 %v281, %v280
  %v343 = vpack.c.b16 %v283, %v282
  %v344 = vpack.c.b16 %v285, %v284
  %v345 = vpack.c.b16 %v287, %v286
  %v346 = vpack.c.b16 %v289, %v288
  %v347 = vpack.c.b16 %v291, %v290
  %v348 = vpack.c.b16 %v293, %v292
  %v349 = vpack.c.b16 %v295, %v294
  %v350 = vpack.c.b16 %v297, %v296
  %v351 = vpack.c.b16 %v299, %v298
  %v352 = vpack.c.b16 %v301, %v300
  %v353 = vpack.c.b16 %v303, %v302
  %v354 = vpack.c.b16 %v305, %v304
  %v355 = vpack.c.b16 %v307, %v306
  %v356 = vpack.c.b16 %v309, %v308
  %v357 = vpack.c.b16 %v311, %v310
  %v358 = vpack.c.b16 %v313, %v312
  %v359 = vpack.c.b16 %v315, %v314
  %v360 = vpack.c.b16 %v317, %v316
  %v361 = vpack.c.b16 %v319, %v318
  %v362 = vpack.c.b16 %v321, %v320
  %v363 = vpack.c.b16 %v323, %v322
  %v364 = vpack.c.b16 %v325, %v324
  %v365 = vpack.c.b16 %v327, %v326
  %v366 = vpack.c.b16 %v329, %v328
  %v367 = vpack.c.b16 %v331, %v330
  %v368 = vpack.c.b16 %v333, %v332
  %v369 = vpack.c.b16 %v335, %v334
  %v370 = vpack.c.b16 %v337, %v336
  %v371 = vpack.c.b16 %v339, %v338
  %v376 = vunpack.c.l.b16 %v208
  %v377 = vunpack.c.h.b16 %v208
  %v378 = vunpack.c.l.b16 %v209
  %v379 = vunpack.c.h.b16 %v209
  %v380 = vunpack.c.l.b16 %v210
  %v381 = vunpack.c.h.b16 %v210
  %v382 = vunpack.c.l.b16 %v211
  %v383 = vunpack.c.h.b16 %v211
  %v384 = vpack.c.b16 %v378, %v376
  %v385 = vpack.c.b16 %v379, %v377
  %v386 = vpack.c.b16 %v382, %v380
  %v387 = vpack.c.b16 %v383, %v381
  %vm392 = vcmask 261120
  %v394 = vsel %vm392, %v340, 0
  %v397 = vsel %vm392, %v341, 0
  %v400 = vsel %vm392, %v342, 0
  %v403 = vsel %vm392, %v343, 0
  %v406 = vsel %vm392, %v344, 0
  %v409 = vsel %vm392, %v345, 0
  %v412 = vsel %vm392, %v346, 0
  %v415 = vsel %vm392, %v347, 0
  %v418 = vsel %vm392, %v348, 0
  %v421 = vsel %vm392, %v349, 0
  %v424 = vsel %vm392, %v350, 0
  %v427 = vsel %vm392, %v351, 0
  %v430 = vsel %vm392, %v352, 0
  %v433 = vsel %vm392, %v353, 0
  %v436 = vsel %vm392, %v354, 0
  %v439 = vsel %vm392, %v355, 0
  %v442 = vsel %vm392, %v356, 0
  %v445 = vsel %vm392, %v357, 0
  %v448 = vsel %vm392, %v358, 0
  %v451 = vsel %vm392, %v359, 0
  %v454 = vsel %vm392, %v360, 0
  %v457 = vsel %vm392, %v361, 0
  %v460 = vsel %vm392, %v362, 0
  %v463 = vsel %vm392, %v363, 0
  %v466 = vsel %vm392, %v364, 0
  %v469 = vsel %vm392, %v365, 0
  %v472 = vsel %vm392, %v366, 0
  %v475 = vsel %vm392, %v367, 0
  %v478 = vsel %vm392, %v368, 0
  %v481 = vsel %vm392, %v369, 0
  %v484 = vsel %vm392, %v370, 0
  %v487 = vsel %vm392, %v371, 0
  %489 = vmatprep.subr.bf16.mxu0 %v385
  %490 = vmatpush1.bf16.msra.mxu0 %v384
  %491 = vmatprep.subr.bf16.mxu0 %v387
  %492 = vmatpush1.bf16.msra.mxu0 %v386
  %493 = vmatprep.subr.bf16.mxu0 0
  %494 = vmatpush1.bf16.msra.mxu0 0
  %495 = vmatprep.subr.bf16.mxu0 0
  %496 = vmatpush1.bf16.msra.mxu0 0
  %497 = vmatprep.subr.bf16.mxu0 0
  %498 = vmatpush1.bf16.msra.mxu0 0
  %499 = vmatprep.subr.bf16.mxu0 0
  %500 = vmatpush1.bf16.msra.mxu0 0
  %501 = vmatprep.subr.bf16.mxu0 0
  %502 = vmatpush1.bf16.msra.mxu0 0
  %503 = vmatprep.subr.bf16.mxu0 0
  %504 = vmatpush1.bf16.msra.mxu0 0
  %505 = vmatprep.subr.bf16.mxu0 0
  %506 = vmatpush1.bf16.msra.mxu0 0
  %507 = vmatprep.subr.bf16.mxu0 0
  %508 = vmatpush1.bf16.msra.mxu0 0
  %509 = vmatprep.subr.bf16.mxu0 0
  %510 = vmatpush1.bf16.msra.mxu0 0
  %511 = vmatprep.subr.bf16.mxu0 0
  %512 = vmatpush1.bf16.msra.mxu0 0
  %513 = vmatprep.subr.bf16.mxu0 0
  %514 = vmatpush1.bf16.msra.mxu0 0
  %515 = vmatprep.subr.bf16.mxu0 0
  %516 = vmatpush1.bf16.msra.mxu0 0
  %517 = vmatprep.subr.bf16.mxu0 0
  %518 = vmatpush1.bf16.msra.mxu0 0
  %519 = vmatprep.subr.bf16.mxu0 0
  %520 = vmatpush1.bf16.msra.mxu0 0
  %521 = vmatprep.mubr.bf16.mxu0 0
  %522 = vmatmul.mubr.bf16.gmra.mrb[0].mxu0 %v394
  %v523 = vpop.f32.mrb[0].mxu0
  %v524 = vadd.f32 0.0, %v523
  %v525 = vpop.f32.mrb[0].mxu0
  %v526 = vadd.f32 0.0, %v525
  %v527 = vpop.f32.mrb[0].mxu0
  %v528 = vadd.f32 0.0, %v527
  %v529 = vpop.f32.mrb[0].mxu0
  %v530 = vadd.f32 0.0, %v529
  %531 = vmatprep.mubr.bf16.mxu0 0
  %532 = vmatmul.mubr.bf16.gmra.mrb[0].mxu0 %v397
  %v533 = vpop.f32.mrb[0].mxu0
  %v534 = vadd.f32 0.0, %v533
  %v535 = vpop.f32.mrb[0].mxu0
  %v536 = vadd.f32 0.0, %v535
  %v537 = vpop.f32.mrb[0].mxu0
  %v538 = vadd.f32 0.0, %v537
  %v539 = vpop.f32.mrb[0].mxu0
  %v540 = vadd.f32 0.0, %v539
  %541 = vmatprep.mubr.bf16.mxu0 0
  %542 = vmatmul.mubr.bf16.gmra.mrb[0].mxu0 %v400
  %v543 = vpop.f32.mrb[0].mxu0
  %v544 = vadd.f32 0.0, %v543
  %v545 = vpop.f32.mrb[0].mxu0
  %v546 = vadd.f32 0.0, %v545
  %v547 = vpop.f32.mrb[0].mxu0
  %v548 = vadd.f32 0.0, %v547
  %v549 = vpop.f32.mrb[0].mxu0
  %v550 = vadd.f32 0.0, %v549
  %551 = vmatprep.mubr.bf16.mxu0 0
  %552 = vmatmul.mubr.bf16.gmra.mrb[0].mxu0 %v403
  %v553 = vpop.f32.mrb[0].mxu0
  %v554 = vadd.f32 0.0, %v553
  %v555 = vpop.f32.mrb[0].mxu0
  %v556 = vadd.f32 0.0, %v555
  %v557 = vpop.f32.mrb[0].mxu0
  %v558 = vadd.f32 0.0, %v557
  %v559 = vpop.f32.mrb[0].mxu0
  %v560 = vadd.f32 0.0, %v559
  %561 = vmatprep.mubr.bf16.mxu0 0
  %562 = vmatmul.mubr.bf16.gmra.mrb[0].mxu0 %v406
  %v563 = vpop.f32.mrb[0].mxu0
  %v564 = vadd.f32 0.0, %v563
  %v565 = vpop.f32.mrb[0].mxu0
  %v566 = vadd.f32 0.0, %v565
  %v567 = vpop.f32.mrb[0].mxu0
  %v568 = vadd.f32 0.0, %v567
  %v569 = vpop.f32.mrb[0].mxu0
  %v570 = vadd.f32 0.0, %v569
  %571 = vmatprep.mubr.bf16.mxu0 0
  %572 = vmatmul.mubr.bf16.gmra.mrb[0].mxu0 %v409
  %v573 = vpop.f32.mrb[0].mxu0
  %v574 = vadd.f32 0.0, %v573
  %v575 = vpop.f32.mrb[0].mxu0
  %v576 = vadd.f32 0.0, %v575
  %v577 = vpop.f32.mrb[0].mxu0
  %v578 = vadd.f32 0.0, %v577
  %v579 = vpop.f32.mrb[0].mxu0
  %v580 = vadd.f32 0.0, %v579
  %581 = vmatprep.mubr.bf16.mxu0 0
  %582 = vmatmul.mubr.bf16.gmra.mrb[0].mxu0 %v412
  %v583 = vpop.f32.mrb[0].mxu0
  %v584 = vadd.f32 0.0, %v583
  %v585 = vpop.f32.mrb[0].mxu0
  %v586 = vadd.f32 0.0, %v585
  %v587 = vpop.f32.mrb[0].mxu0
  %v588 = vadd.f32 0.0, %v587
  %v589 = vpop.f32.mrb[0].mxu0
  %v590 = vadd.f32 0.0, %v589
  %591 = vmatprep.mubr.bf16.mxu0 0
  %592 = vmatmul.mubr.bf16.gmra.mrb[0].mxu0 %v415
  %v593 = vpop.f32.mrb[0].mxu0
  %v594 = vadd.f32 0.0, %v593
  %v595 = vpop.f32.mrb[0].mxu0
  %v596 = vadd.f32 0.0, %v595
  %v597 = vpop.f32.mrb[0].mxu0
  %v598 = vadd.f32 0.0, %v597
  %v599 = vpop.f32.mrb[0].mxu0
  %v600 = vadd.f32 0.0, %v599
  %601 = vmatprep.mubr.bf16.mxu0 0
  %602 = vmatmul.mubr.bf16.gmra.mrb[0].mxu0 %v418
  %v603 = vpop.f32.mrb[0].mxu0
  %v604 = vadd.f32 0.0, %v603
  %v605 = vpop.f32.mrb[0].mxu0
  %v606 = vadd.f32 0.0, %v605
  %v607 = vpop.f32.mrb[0].mxu0
  %v608 = vadd.f32 0.0, %v607
  %v609 = vpop.f32.mrb[0].mxu0
  %v610 = vadd.f32 0.0, %v609
  %611 = vmatprep.mubr.bf16.mxu0 0
  %612 = vmatmul.mubr.bf16.gmra.mrb[0].mxu0 %v421
  %v613 = vpop.f32.mrb[0].mxu0
  %v614 = vadd.f32 0.0, %v613
  %v615 = vpop.f32.mrb[0].mxu0
  %v616 = vadd.f32 0.0, %v615
  %v617 = vpop.f32.mrb[0].mxu0
  %v618 = vadd.f32 0.0, %v617
  %v619 = vpop.f32.mrb[0].mxu0
  %v620 = vadd.f32 0.0, %v619
  %621 = vmatprep.mubr.bf16.mxu0 0
  %622 = vmatmul.mubr.bf16.gmra.mrb[0].mxu0 %v424
  %v623 = vpop.f32.mrb[0].mxu0
  %v624 = vadd.f32 0.0, %v623
  %v625 = vpop.f32.mrb[0].mxu0
  %v626 = vadd.f32 0.0, %v625
  %v627 = vpop.f32.mrb[0].mxu0
  %v628 = vadd.f32 0.0, %v627
  %v629 = vpop.f32.mrb[0].mxu0
  %v630 = vadd.f32 0.0, %v629
  %631 = vmatprep.mubr.bf16.mxu0 0
  %632 = vmatmul.mubr.bf16.gmra.mrb[0].mxu0 %v427
  %v633 = vpop.f32.mrb[0].mxu0
  %v634 = vadd.f32 0.0, %v633
  %v635 = vpop.f32.mrb[0].mxu0
  %v636 = vadd.f32 0.0, %v635
  %v637 = vpop.f32.mrb[0].mxu0
  %v638 = vadd.f32 0.0, %v637
  %v639 = vpop.f32.mrb[0].mxu0
  %v640 = vadd.f32 0.0, %v639
  %641 = vmatprep.mubr.bf16.mxu0 0
  %642 = vmatmul.mubr.bf16.gmra.mrb[0].mxu0 %v430
  %v643 = vpop.f32.mrb[0].mxu0
  %v644 = vadd.f32 0.0, %v643
  %v645 = vpop.f32.mrb[0].mxu0
  %v646 = vadd.f32 0.0, %v645
  %v647 = vpop.f32.mrb[0].mxu0
  %v648 = vadd.f32 0.0, %v647
  %v649 = vpop.f32.mrb[0].mxu0
  %v650 = vadd.f32 0.0, %v649
  %651 = vmatprep.mubr.bf16.mxu0 0
  %652 = vmatmul.mubr.bf16.gmra.mrb[0].mxu0 %v433
  %v653 = vpop.f32.mrb[0].mxu0
  %v654 = vadd.f32 0.0, %v653
  %v655 = vpop.f32.mrb[0].mxu0
  %v656 = vadd.f32 0.0, %v655
  %v657 = vpop.f32.mrb[0].mxu0
  %v658 = vadd.f32 0.0, %v657
  %v659 = vpop.f32.mrb[0].mxu0
  %v660 = vadd.f32 0.0, %v659
  %661 = vmatprep.mubr.bf16.mxu0 0
  %662 = vmatmul.mubr.bf16.gmra.mrb[0].mxu0 %v436
  %v663 = vpop.f32.mrb[0].mxu0
  %v664 = vadd.f32 0.0, %v663
  %v665 = vpop.f32.mrb[0].mxu0
  %v666 = vadd.f32 0.0, %v665
  %v667 = vpop.f32.mrb[0].mxu0
  %v668 = vadd.f32 0.0, %v667
  %v669 = vpop.f32.mrb[0].mxu0
  %v670 = vadd.f32 0.0, %v669
  %671 = vmatprep.mubr.bf16.mxu0 0
  %672 = vmatmul.mubr.bf16.gmra.mrb[0].mxu0 %v439
  %v673 = vpop.f32.mrb[0].mxu0
  %v674 = vadd.f32 0.0, %v673
  %v675 = vpop.f32.mrb[0].mxu0
  %v676 = vadd.f32 0.0, %v675
  %v677 = vpop.f32.mrb[0].mxu0
  %v678 = vadd.f32 0.0, %v677
  %v679 = vpop.f32.mrb[0].mxu0
  %v680 = vadd.f32 0.0, %v679
  %681 = vmatprep.mubr.bf16.mxu0 0
  %682 = vmatmul.mubr.bf16.gmra.mrb[0].mxu0 %v442
  %v683 = vpop.f32.mrb[0].mxu0
  %v684 = vadd.f32 0.0, %v683
  %v685 = vpop.f32.mrb[0].mxu0
  %v686 = vadd.f32 0.0, %v685
  %v687 = vpop.f32.mrb[0].mxu0
  %v688 = vadd.f32 0.0, %v687
  %v689 = vpop.f32.mrb[0].mxu0
  %v690 = vadd.f32 0.0, %v689
  %691 = vmatprep.mubr.bf16.mxu0 0
  %692 = vmatmul.mubr.bf16.gmra.mrb[0].mxu0 %v445
  %v693 = vpop.f32.mrb[0].mxu0
  %v694 = vadd.f32 0.0, %v693
  %v695 = vpop.f32.mrb[0].mxu0
  %v696 = vadd.f32 0.0, %v695
  %v697 = vpop.f32.mrb[0].mxu0
  %v698 = vadd.f32 0.0, %v697
  %v699 = vpop.f32.mrb[0].mxu0
  %v700 = vadd.f32 0.0, %v699
  %701 = vmatprep.mubr.bf16.mxu0 0
  %702 = vmatmul.mubr.bf16.gmra.mrb[0].mxu0 %v448
  %v703 = vpop.f32.mrb[0].mxu0
  %v704 = vadd.f32 0.0, %v703
  %v705 = vpop.f32.mrb[0].mxu0
  %v706 = vadd.f32 0.0, %v705
  %v707 = vpop.f32.mrb[0].mxu0
  %v708 = vadd.f32 0.0, %v707
  %v709 = vpop.f32.mrb[0].mxu0
  %v710 = vadd.f32 0.0, %v709
  %711 = vmatprep.mubr.bf16.mxu0 0
  %712 = vmatmul.mubr.bf16.gmra.mrb[0].mxu0 %v451
  %v713 = vpop.f32.mrb[0].mxu0
  %v714 = vadd.f32 0.0, %v713
  %v715 = vpop.f32.mrb[0].mxu0
  %v716 = vadd.f32 0.0, %v715
  %v717 = vpop.f32.mrb[0].mxu0
  %v718 = vadd.f32 0.0, %v717
  %v719 = vpop.f32.mrb[0].mxu0
  %v720 = vadd.f32 0.0, %v719
  %721 = vmatprep.mubr.bf16.mxu0 0
  %722 = vmatmul.mubr.bf16.gmra.mrb[0].mxu0 %v454
  %v723 = vpop.f32.mrb[0].mxu0
  %v724 = vadd.f32 0.0, %v723
  %v725 = vpop.f32.mrb[0].mxu0
  %v726 = vadd.f32 0.0, %v725
  %v727 = vpop.f32.mrb[0].mxu0
  %v728 = vadd.f32 0.0, %v727
  %v729 = vpop.f32.mrb[0].mxu0
  %v730 = vadd.f32 0.0, %v729
  %731 = vmatprep.mubr.bf16.mxu0 0
  %732 = vmatmul.mubr.bf16.gmra.mrb[0].mxu0 %v457
  %v733 = vpop.f32.mrb[0].mxu0
  %v734 = vadd.f32 0.0, %v733
  %v735 = vpop.f32.mrb[0].mxu0
  %v736 = vadd.f32 0.0, %v735
  %v737 = vpop.f32.mrb[0].mxu0
  %v738 = vadd.f32 0.0, %v737
  %v739 = vpop.f32.mrb[0].mxu0
  %v740 = vadd.f32 0.0, %v739
  %741 = vmatprep.mubr.bf16.mxu0 0
  %742 = vmatmul.mubr.bf16.gmra.mrb[0].mxu0 %v460
  %v743 = vpop.f32.mrb[0].mxu0
  %v744 = vadd.f32 0.0, %v743
  %v745 = vpop.f32.mrb[0].mxu0
  %v746 = vadd.f32 0.0, %v745
  %v747 = vpop.f32.mrb[0].mxu0
  %v748 = vadd.f32 0.0, %v747
  %v749 = vpop.f32.mrb[0].mxu0
  %v750 = vadd.f32 0.0, %v749
  %751 = vmatprep.mubr.bf16.mxu0 0
  %752 = vmatmul.mubr.bf16.gmra.mrb[0].mxu0 %v463
  %v753 = vpop.f32.mrb[0].mxu0
  %v754 = vadd.f32 0.0, %v753
  %v755 = vpop.f32.mrb[0].mxu0
  %v756 = vadd.f32 0.0, %v755
  %v757 = vpop.f32.mrb[0].mxu0
  %v758 = vadd.f32 0.0, %v757
  %v759 = vpop.f32.mrb[0].mxu0
  %v760 = vadd.f32 0.0, %v759
  %761 = vmatprep.mubr.bf16.mxu0 0
  %762 = vmatmul.mubr.bf16.gmra.mrb[0].mxu0 %v466
  %v763 = vpop.f32.mrb[0].mxu0
  %v764 = vadd.f32 0.0, %v763
  %v765 = vpop.f32.mrb[0].mxu0
  %v766 = vadd.f32 0.0, %v765
  %v767 = vpop.f32.mrb[0].mxu0
  %v768 = vadd.f32 0.0, %v767
  %v769 = vpop.f32.mrb[0].mxu0
  %v770 = vadd.f32 0.0, %v769
  %771 = vmatprep.mubr.bf16.mxu0 0
  %772 = vmatmul.mubr.bf16.gmra.mrb[0].mxu0 %v469
  %v773 = vpop.f32.mrb[0].mxu0
  %v774 = vadd.f32 0.0, %v773
  %v775 = vpop.f32.mrb[0].mxu0
  %v776 = vadd.f32 0.0, %v775
  %v777 = vpop.f32.mrb[0].mxu0
  %v778 = vadd.f32 0.0, %v777
  %v779 = vpop.f32.mrb[0].mxu0
  %v780 = vadd.f32 0.0, %v779
  %781 = vmatprep.mubr.bf16.mxu0 0
  %782 = vmatmul.mubr.bf16.gmra.mrb[0].mxu0 %v472
  %v783 = vpop.f32.mrb[0].mxu0
  %v784 = vadd.f32 0.0, %v783
  %v785 = vpop.f32.mrb[0].mxu0
  %v786 = vadd.f32 0.0, %v785
  %v787 = vpop.f32.mrb[0].mxu0
  %v788 = vadd.f32 0.0, %v787
  %v789 = vpop.f32.mrb[0].mxu0
  %v790 = vadd.f32 0.0, %v789
  %791 = vmatprep.mubr.bf16.mxu0 0
  %792 = vmatmul.mubr.bf16.gmra.mrb[0].mxu0 %v475
  %v793 = vpop.f32.mrb[0].mxu0
  %v794 = vadd.f32 0.0, %v793
  %v795 = vpop.f32.mrb[0].mxu0
  %v796 = vadd.f32 0.0, %v795
  %v797 = vpop.f32.mrb[0].mxu0
  %v798 = vadd.f32 0.0, %v797
  %v799 = vpop.f32.mrb[0].mxu0
  %v800 = vadd.f32 0.0, %v799
  %801 = vmatprep.mubr.bf16.mxu0 0
  %802 = vmatmul.mubr.bf16.gmra.mrb[0].mxu0 %v478
  %v803 = vpop.f32.mrb[0].mxu0
  %v804 = vadd.f32 0.0, %v803
  %v805 = vpop.f32.mrb[0].mxu0
  %v806 = vadd.f32 0.0, %v805
  %v807 = vpop.f32.mrb[0].mxu0
  %v808 = vadd.f32 0.0, %v807
  %v809 = vpop.f32.mrb[0].mxu0
  %v810 = vadd.f32 0.0, %v809
  %811 = vmatprep.mubr.bf16.mxu0 0
  %812 = vmatmul.mubr.bf16.gmra.mrb[0].mxu0 %v481
  %v813 = vpop.f32.mrb[0].mxu0
  %v814 = vadd.f32 0.0, %v813
  %v815 = vpop.f32.mrb[0].mxu0
  %v816 = vadd.f32 0.0, %v815
  %v817 = vpop.f32.mrb[0].mxu0
  %v818 = vadd.f32 0.0, %v817
  %v819 = vpop.f32.mrb[0].mxu0
  %v820 = vadd.f32 0.0, %v819
  %821 = vmatprep.mubr.bf16.mxu0 0
  %822 = vmatmul.mubr.bf16.gmra.mrb[0].mxu0 %v484
  %v823 = vpop.f32.mrb[0].mxu0
  %v824 = vadd.f32 0.0, %v823
  %v825 = vpop.f32.mrb[0].mxu0
  %v826 = vadd.f32 0.0, %v825
  %v827 = vpop.f32.mrb[0].mxu0
  %v828 = vadd.f32 0.0, %v827
  %v829 = vpop.f32.mrb[0].mxu0
  %v830 = vadd.f32 0.0, %v829
  %831 = vmatprep.mubr.bf16.mxu0 0
  %832 = vmatmul.mubr.bf16.gmra.mrb[0].mxu0 %v487
  %v833 = vpop.f32.mrb[0].mxu0
  %v834 = vadd.f32 0.0, %v833
  %v835 = vpop.f32.mrb[0].mxu0
  %v836 = vadd.f32 0.0, %v835
  %v837 = vpop.f32.mrb[0].mxu0
  %v838 = vadd.f32 0.0, %v837
  %v839 = vpop.f32.mrb[0].mxu0
  %v840 = vadd.f32 0.0, %v839
  %841 = vdwg.mxu0
  %v842 = vld [vmem:[#allocation2] sm:$0xff]
  %v843 = vld [vmem:[#allocation2 + $0x8] sm:$0xff]
  %v844 = vld [vmem:[#allocation2 + $0x10] sm:$0xff]
  %v845 = vld [vmem:[#allocation2 + $0x18] sm:$0xff]
  %v846 = vld [vmem:[#allocation2 + $0x20] sm:$0xff]
  %v847 = vld [vmem:[#allocation2 + $0x28] sm:$0xff]
  %v848 = vld [vmem:[#allocation2 + $0x30] sm:$0xff]
  %v849 = vld [vmem:[#allocation2 + $0x38] sm:$0xff]
  %v850 = vld [vmem:[#allocation2 + $0x40] sm:$0xff]
  %v851 = vld [vmem:[#allocation2 + $0x48] sm:$0xff]
  %v852 = vld [vmem:[#allocation2 + $0x50] sm:$0xff]
  %v853 = vld [vmem:[#allocation2 + $0x58] sm:$0xff]
  %v854 = vld [vmem:[#allocation2 + $0x60] sm:$0xff]
  %v855 = vld [vmem:[#allocation2 + $0x68] sm:$0xff]
  %v856 = vld [vmem:[#allocation2 + $0x70] sm:$0xff]
  %v857 = vld [vmem:[#allocation2 + $0x78] sm:$0xff]
  %v858 = vld [vmem:[#allocation2 + $0x80] sm:$0xff]
  %v859 = vld [vmem:[#allocation2 + $0x88] sm:$0xff]
  %v860 = vld [vmem:[#allocation2 + $0x90] sm:$0xff]
  %v861 = vld [vmem:[#allocation2 + $0x98] sm:$0xff]
  %v862 = vld [vmem:[#allocation2 + $0xa0] sm:$0xff]
  %v863 = vld [vmem:[#allocation2 + $0xa8] sm:$0xff]
  %v864 = vld [vmem:[#allocation2 + $0xb0] sm:$0xff]
  %v865 = vld [vmem:[#allocation2 + $0xb8] sm:$0xff]
  %v866 = vld [vmem:[#allocation2 + $0xc0] sm:$0xff]
  %v867 = vld [vmem:[#allocation2 + $0xc8] sm:$0xff]
  %v868 = vld [vmem:[#allocation2 + $0xd0] sm:$0xff]
  %v869 = vld [vmem:[#allocation2 + $0xd8] sm:$0xff]
  %v870 = vld [vmem:[#allocation2 + $0xe0] sm:$0xff]
  %v871 = vld [vmem:[#allocation2 + $0xe8] sm:$0xff]
  %v872 = vld [vmem:[#allocation2 + $0xf0] sm:$0xff]
  %v873 = vld [vmem:[#allocation2 + $0xf8] sm:$0xff]
  %v874 = vld [vmem:[#allocation2 + $0x100] sm:$0xff]
  %v875 = vld [vmem:[#allocation2 + $0x108] sm:$0xff]
  %v876 = vld [vmem:[#allocation2 + $0x110] sm:$0xff]
  %v877 = vld [vmem:[#allocation2 + $0x118] sm:$0xff]
  %v878 = vld [vmem:[#allocation2 + $0x120] sm:$0xff]
  %v879 = vld [vmem:[#allocation2 + $0x128] sm:$0xff]
  %v880 = vld [vmem:[#allocation2 + $0x130] sm:$0xff]
  %v881 = vld [vmem:[#allocation2 + $0x138] sm:$0xff]
  %v882 = vld [vmem:[#allocation2 + $0x140] sm:$0xff]
  %v883 = vld [vmem:[#allocation2 + $0x148] sm:$0xff]
  %v884 = vld [vmem:[#allocation2 + $0x150] sm:$0xff]
  %v885 = vld [vmem:[#allocation2 + $0x158] sm:$0xff]
  %v886 = vld [vmem:[#allocation2 + $0x160] sm:$0xff]
  %v887 = vld [vmem:[#allocation2 + $0x168] sm:$0xff]
  %v888 = vld [vmem:[#allocation2 + $0x170] sm:$0xff]
  %v889 = vld [vmem:[#allocation2 + $0x178] sm:$0xff]
  %v890 = vld [vmem:[#allocation2 + $0x180] sm:$0xff]
  %v891 = vld [vmem:[#allocation2 + $0x188] sm:$0xff]
  %v892 = vld [vmem:[#allocation2 + $0x190] sm:$0xff]
  %v893 = vld [vmem:[#allocation2 + $0x198] sm:$0xff]
  %v894 = vld [vmem:[#allocation2 + $0x1a0] sm:$0xff]
  %v895 = vld [vmem:[#allocation2 + $0x1a8] sm:$0xff]
  %v896 = vld [vmem:[#allocation2 + $0x1b0] sm:$0xff]
  %v897 = vld [vmem:[#allocation2 + $0x1b8] sm:$0xff]
  %v898 = vld [vmem:[#allocation2 + $0x1c0] sm:$0xff]
  %v899 = vld [vmem:[#allocation2 + $0x1c8] sm:$0xff]
  %v900 = vld [vmem:[#allocation2 + $0x1d0] sm:$0xff]
  %v901 = vld [vmem:[#allocation2 + $0x1d8] sm:$0xff]
  %v902 = vld [vmem:[#allocation2 + $0x1e0] sm:$0xff]
  %v903 = vld [vmem:[#allocation2 + $0x1e8] sm:$0xff]
  %v904 = vld [vmem:[#allocation2 + $0x1f0] sm:$0xff]
  %v905 = vld [vmem:[#allocation2 + $0x1f8] sm:$0xff]
  %v906 = vld [vmem:[#allocation2 + $0x200] sm:$0xff]
  %v907 = vld [vmem:[#allocation2 + $0x208] sm:$0xff]
  %v908 = vld [vmem:[#allocation2 + $0x210] sm:$0xff]
  %v909 = vld [vmem:[#allocation2 + $0x218] sm:$0xff]
  %v910 = vld [vmem:[#allocation2 + $0x220] sm:$0xff]
  %v911 = vld [vmem:[#allocation2 + $0x228] sm:$0xff]
  %v912 = vld [vmem:[#allocation2 + $0x230] sm:$0xff]
  %v913 = vld [vmem:[#allocation2 + $0x238] sm:$0xff]
  %v914 = vld [vmem:[#allocation2 + $0x240] sm:$0xff]
  %v915 = vld [vmem:[#allocation2 + $0x248] sm:$0xff]
  %v916 = vld [vmem:[#allocation2 + $0x250] sm:$0xff]
  %v917 = vld [vmem:[#allocation2 + $0x258] sm:$0xff]
  %v918 = vld [vmem:[#allocation2 + $0x260] sm:$0xff]
  %v919 = vld [vmem:[#allocation2 + $0x268] sm:$0xff]
  %v920 = vld [vmem:[#allocation2 + $0x270] sm:$0xff]
  %v921 = vld [vmem:[#allocation2 + $0x278] sm:$0xff]
  %v922 = vld [vmem:[#allocation2 + $0x280] sm:$0xff]
  %v923 = vld [vmem:[#allocation2 + $0x288] sm:$0xff]
  %v924 = vld [vmem:[#allocation2 + $0x290] sm:$0xff]
  %v925 = vld [vmem:[#allocation2 + $0x298] sm:$0xff]
  %v926 = vld [vmem:[#allocation2 + $0x2a0] sm:$0xff]
  %v927 = vld [vmem:[#allocation2 + $0x2a8] sm:$0xff]
  %v928 = vld [vmem:[#allocation2 + $0x2b0] sm:$0xff]
  %v929 = vld [vmem:[#allocation2 + $0x2b8] sm:$0xff]
  %v930 = vld [vmem:[#allocation2 + $0x2c0] sm:$0xff]
  %v931 = vld [vmem:[#allocation2 + $0x2c8] sm:$0xff]
  %v932 = vld [vmem:[#allocation2 + $0x2d0] sm:$0xff]
  %v933 = vld [vmem:[#allocation2 + $0x2d8] sm:$0xff]
  %v934 = vld [vmem:[#allocation2 + $0x2e0] sm:$0xff]
  %v935 = vld [vmem:[#allocation2 + $0x2e8] sm:$0xff]
  %v936 = vld [vmem:[#allocation2 + $0x2f0] sm:$0xff]
  %v937 = vld [vmem:[#allocation2 + $0x2f8] sm:$0xff]
  %v938 = vld [vmem:[#allocation2 + $0x300] sm:$0xff]
  %v939 = vld [vmem:[#allocation2 + $0x308] sm:$0xff]
  %v940 = vld [vmem:[#allocation2 + $0x310] sm:$0xff]
  %v941 = vld [vmem:[#allocation2 + $0x318] sm:$0xff]
  %v942 = vld [vmem:[#allocation2 + $0x320] sm:$0xff]
  %v943 = vld [vmem:[#allocation2 + $0x328] sm:$0xff]
  %v944 = vld [vmem:[#allocation2 + $0x330] sm:$0xff]
  %v945 = vld [vmem:[#allocation2 + $0x338] sm:$0xff]
  %v946 = vld [vmem:[#allocation2 + $0x340] sm:$0xff]
  %v947 = vld [vmem:[#allocation2 + $0x348] sm:$0xff]
  %v948 = vld [vmem:[#allocation2 + $0x350] sm:$0xff]
  %v949 = vld [vmem:[#allocation2 + $0x358] sm:$0xff]
  %v950 = vld [vmem:[#allocation2 + $0x360] sm:$0xff]
  %v951 = vld [vmem:[#allocation2 + $0x368] sm:$0xff]
  %v952 = vld [vmem:[#allocation2 + $0x370] sm:$0xff]
  %v953 = vld [vmem:[#allocation2 + $0x378] sm:$0xff]
  %v954 = vld [vmem:[#allocation2 + $0x380] sm:$0xff]
  %v955 = vld [vmem:[#allocation2 + $0x388] sm:$0xff]
  %v956 = vld [vmem:[#allocation2 + $0x390] sm:$0xff]
  %v957 = vld [vmem:[#allocation2 + $0x398] sm:$0xff]
  %v958 = vld [vmem:[#allocation2 + $0x3a0] sm:$0xff]
  %v959 = vld [vmem:[#allocation2 + $0x3a8] sm:$0xff]
  %v960 = vld [vmem:[#allocation2 + $0x3b0] sm:$0xff]
  %v961 = vld [vmem:[#allocation2 + $0x3b8] sm:$0xff]
  %v962 = vld [vmem:[#allocation2 + $0x3c0] sm:$0xff]
  %v963 = vld [vmem:[#allocation2 + $0x3c8] sm:$0xff]
  %v964 = vld [vmem:[#allocation2 + $0x3d0] sm:$0xff]
  %v965 = vld [vmem:[#allocation2 + $0x3d8] sm:$0xff]
  %v966 = vld [vmem:[#allocation2 + $0x3e0] sm:$0xff]
  %v967 = vld [vmem:[#allocation2 + $0x3e8] sm:$0xff]
  %v968 = vld [vmem:[#allocation2 + $0x3f0] sm:$0xff]
  %v969 = vld [vmem:[#allocation2 + $0x3f8] sm:$0xff]
  %v970 = vmul.f32 %v524, 1.442695
  %v971 = vpow.pop %v970
  %v972 = vmul.f32 %v526, 1.442695
  %v973 = vpow.pop %v972
  %v974 = vmul.f32 %v528, 1.442695
  %v975 = vpow.pop %v974
  %v976 = vmul.f32 %v530, 1.442695
  %v977 = vpow.pop %v976
  %v978 = vmul.f32 %v534, 1.442695
  %v979 = vpow.pop %v978
  %v980 = vmul.f32 %v536, 1.442695
  %v981 = vpow.pop %v980
  %v982 = vmul.f32 %v538, 1.442695
  %v983 = vpow.pop %v982
  %v984 = vmul.f32 %v540, 1.442695
  %v985 = vpow.pop %v984
  %v986 = vmul.f32 %v544, 1.442695
  %v987 = vpow.pop %v986
  %v988 = vmul.f32 %v546, 1.442695
  %v989 = vpow.pop %v988
  %v990 = vmul.f32 %v548, 1.442695
  %v991 = vpow.pop %v990
  %v992 = vmul.f32 %v550, 1.442695
  %v993 = vpow.pop %v992
  %v994 = vmul.f32 %v554, 1.442695
  %v995 = vpow.pop %v994
  %v996 = vmul.f32 %v556, 1.442695
  %v997 = vpow.pop %v996
  %v998 = vmul.f32 %v558, 1.442695
  %v999 = vpow.pop %v998
  %v1000 = vmul.f32 %v560, 1.442695
  %v1001 = vpow.pop %v1000
  %v1002 = vmul.f32 %v564, 1.442695
  %v1003 = vpow.pop %v1002
  %v1004 = vmul.f32 %v566, 1.442695
  %v1005 = vpow.pop %v1004
  %v1006 = vmul.f32 %v568, 1.442695
  %v1007 = vpow.pop %v1006
  %v1008 = vmul.f32 %v570, 1.442695
  %v1009 = vpow.pop %v1008
  %v1010 = vmul.f32 %v574, 1.442695
  %v1011 = vpow.pop %v1010
  %v1012 = vmul.f32 %v576, 1.442695
  %v1013 = vpow.pop %v1012
  %v1014 = vmul.f32 %v578, 1.442695
  %v1015 = vpow.pop %v1014
  %v1016 = vmul.f32 %v580, 1.442695
  %v1017 = vpow.pop %v1016
  %v1018 = vmul.f32 %v584, 1.442695
  %v1019 = vpow.pop %v1018
  %v1020 = vmul.f32 %v586, 1.442695
  %v1021 = vpow.pop %v1020
  %v1022 = vmul.f32 %v588, 1.442695
  %v1023 = vpow.pop %v1022
  %v1024 = vmul.f32 %v590, 1.442695
  %v1025 = vpow.pop %v1024
  %v1026 = vmul.f32 %v594, 1.442695
  %v1027 = vpow.pop %v1026
  %v1028 = vmul.f32 %v596, 1.442695
  %v1029 = vpow.pop %v1028
  %v1030 = vmul.f32 %v598, 1.442695
  %v1031 = vpow.pop %v1030
  %v1032 = vmul.f32 %v600, 1.442695
  %v1033 = vpow.pop %v1032
  %v1034 = vmul.f32 %v604, 1.442695
  %v1035 = vpow.pop %v1034
  %v1036 = vmul.f32 %v606, 1.442695
  %v1037 = vpow.pop %v1036
  %v1038 = vmul.f32 %v608, 1.442695
  %v1039 = vpow.pop %v1038
  %v1040 = vmul.f32 %v610, 1.442695
  %v1041 = vpow.pop %v1040
  %v1042 = vmul.f32 %v614, 1.442695
  %v1043 = vpow.pop %v1042
  %v1044 = vmul.f32 %v616, 1.442695
  %v1045 = vpow.pop %v1044
  %v1046 = vmul.f32 %v618, 1.442695
  %v1047 = vpow.pop %v1046
  %v1048 = vmul.f32 %v620, 1.442695
  %v1049 = vpow.pop %v1048
  %v1050 = vmul.f32 %v624, 1.442695
  %v1051 = vpow.pop %v1050
  %v1052 = vmul.f32 %v626, 1.442695
  %v1053 = vpow.pop %v1052
  %v1054 = vmul.f32 %v628, 1.442695
  %v1055 = vpow.pop %v1054
  %v1056 = vmul.f32 %v630, 1.442695
  %v1057 = vpow.pop %v1056
  %v1058 = vmul.f32 %v634, 1.442695
  %v1059 = vpow.pop %v1058
  %v1060 = vmul.f32 %v636, 1.442695
  %v1061 = vpow.pop %v1060
  %v1062 = vmul.f32 %v638, 1.442695
  %v1063 = vpow.pop %v1062
  %v1064 = vmul.f32 %v640, 1.442695
  %v1065 = vpow.pop %v1064
  %v1066 = vmul.f32 %v644, 1.442695
  %v1067 = vpow.pop %v1066
  %v1068 = vmul.f32 %v646, 1.442695
  %v1069 = vpow.pop %v1068
  %v1070 = vmul.f32 %v648, 1.442695
  %v1071 = vpow.pop %v1070
  %v1072 = vmul.f32 %v650, 1.442695
  %v1073 = vpow.pop %v1072
  %v1074 = vmul.f32 %v654, 1.442695
  %v1075 = vpow.pop %v1074
  %v1076 = vmul.f32 %v656, 1.442695
  %v1077 = vpow.pop %v1076
  %v1078 = vmul.f32 %v658, 1.442695
  %v1079 = vpow.pop %v1078
  %v1080 = vmul.f32 %v660, 1.442695
  %v1081 = vpow.pop %v1080
  %v1082 = vmul.f32 %v664, 1.442695
  %v1083 = vpow.pop %v1082
  %v1084 = vmul.f32 %v666, 1.442695
  %v1085 = vpow.pop %v1084
  %v1086 = vmul.f32 %v668, 1.442695
  %v1087 = vpow.pop %v1086
  %v1088 = vmul.f32 %v670, 1.442695
  %v1089 = vpow.pop %v1088
  %v1090 = vmul.f32 %v674, 1.442695
  %v1091 = vpow.pop %v1090
  %v1092 = vmul.f32 %v676, 1.442695
  %v1093 = vpow.pop %v1092
  %v1094 = vmul.f32 %v678, 1.442695
  %v1095 = vpow.pop %v1094
  %v1096 = vmul.f32 %v680, 1.442695
  %v1097 = vpow.pop %v1096
  %v1098 = vmul.f32 %v684, 1.442695
  %v1099 = vpow.pop %v1098
  %v1100 = vmul.f32 %v686, 1.442695
  %v1101 = vpow.pop %v1100
  %v1102 = vmul.f32 %v688, 1.442695
  %v1103 = vpow.pop %v1102
  %v1104 = vmul.f32 %v690, 1.442695
  %v1105 = vpow.pop %v1104
  %v1106 = vmul.f32 %v694, 1.442695
  %v1107 = vpow.pop %v1106
  %v1108 = vmul.f32 %v696, 1.442695
  %v1109 = vpow.pop %v1108
  %v1110 = vmul.f32 %v698, 1.442695
  %v1111 = vpow.pop %v1110
  %v1112 = vmul.f32 %v700, 1.442695
  %v1113 = vpow.pop %v1112
  %v1114 = vmul.f32 %v704, 1.442695
  %v1115 = vpow.pop %v1114
  %v1116 = vmul.f32 %v706, 1.442695
  %v1117 = vpow.pop %v1116
  %v1118 = vmul.f32 %v708, 1.442695
  %v1119 = vpow.pop %v1118
  %v1120 = vmul.f32 %v710, 1.442695
  %v1121 = vpow.pop %v1120
  %v1122 = vmul.f32 %v714, 1.442695
  %v1123 = vpow.pop %v1122
  %v1124 = vmul.f32 %v716, 1.442695
  %v1125 = vpow.pop %v1124
  %v1126 = vmul.f32 %v718, 1.442695
  %v1127 = vpow.pop %v1126
  %v1128 = vmul.f32 %v720, 1.442695
  %v1129 = vpow.pop %v1128
  %v1130 = vmul.f32 %v724, 1.442695
  %v1131 = vpow.pop %v1130
  %v1132 = vmul.f32 %v726, 1.442695
  %v1133 = vpow.pop %v1132
  %v1134 = vmul.f32 %v728, 1.442695
  %v1135 = vpow.pop %v1134
  %v1136 = vmul.f32 %v730, 1.442695
  %v1137 = vpow.pop %v1136
  %v1138 = vmul.f32 %v734, 1.442695
  %v1139 = vpow.pop %v1138
  %v1140 = vmul.f32 %v736, 1.442695
  %v1141 = vpow.pop %v1140
  %v1142 = vmul.f32 %v738, 1.442695
  %v1143 = vpow.pop %v1142
  %v1144 = vmul.f32 %v740, 1.442695
  %v1145 = vpow.pop %v1144
  %v1146 = vmul.f32 %v744, 1.442695
  %v1147 = vpow.pop %v1146
  %v1148 = vmul.f32 %v746, 1.442695
  %v1149 = vpow.pop %v1148
  %v1150 = vmul.f32 %v748, 1.442695
  %v1151 = vpow.pop %v1150
  %v1152 = vmul.f32 %v750, 1.442695
  %v1153 = vpow.pop %v1152
  %v1154 = vmul.f32 %v754, 1.442695
  %v1155 = vpow.pop %v1154
  %v1156 = vmul.f32 %v756, 1.442695
  %v1157 = vpow.pop %v1156
  %v1158 = vmul.f32 %v758, 1.442695
  %v1159 = vpow.pop %v1158
  %v1160 = vmul.f32 %v760, 1.442695
  %v1161 = vpow.pop %v1160
  %v1162 = vmul.f32 %v764, 1.442695
  %v1163 = vpow.pop %v1162
  %v1164 = vmul.f32 %v766, 1.442695
  %v1165 = vpow.pop %v1164
  %v1166 = vmul.f32 %v768, 1.442695
  %v1167 = vpow.pop %v1166
  %v1168 = vmul.f32 %v770, 1.442695
  %v1169 = vpow.pop %v1168
  %v1170 = vmul.f32 %v774, 1.442695
  %v1171 = vpow.pop %v1170
  %v1172 = vmul.f32 %v776, 1.442695
  %v1173 = vpow.pop %v1172
  %v1174 = vmul.f32 %v778, 1.442695
  %v1175 = vpow.pop %v1174
  %v1176 = vmul.f32 %v780, 1.442695
  %v1177 = vpow.pop %v1176
  %v1178 = vmul.f32 %v784, 1.442695
  %v1179 = vpow.pop %v1178
  %v1180 = vmul.f32 %v786, 1.442695
  %v1181 = vpow.pop %v1180
  %v1182 = vmul.f32 %v788, 1.442695
  %v1183 = vpow.pop %v1182
  %v1184 = vmul.f32 %v790, 1.442695
  %v1185 = vpow.pop %v1184
  %v1186 = vmul.f32 %v794, 1.442695
  %v1187 = vpow.pop %v1186
  %v1188 = vmul.f32 %v796, 1.442695
  %v1189 = vpow.pop %v1188
  %v1190 = vmul.f32 %v798, 1.442695
  %v1191 = vpow.pop %v1190
  %v1192 = vmul.f32 %v800, 1.442695
  %v1193 = vpow.pop %v1192
  %v1194 = vmul.f32 %v804, 1.442695
  %v1195 = vpow.pop %v1194
  %v1196 = vmul.f32 %v806, 1.442695
  %v1197 = vpow.pop %v1196
  %v1198 = vmul.f32 %v808, 1.442695
  %v1199 = vpow.pop %v1198
  %v1200 = vmul.f32 %v810, 1.442695
  %v1201 = vpow.pop %v1200
  %v1202 = vmul.f32 %v814, 1.442695
  %v1203 = vpow.pop %v1202
  %v1204 = vmul.f32 %v816, 1.442695
  %v1205 = vpow.pop %v1204
  %v1206 = vmul.f32 %v818, 1.442695
  %v1207 = vpow.pop %v1206
  %v1208 = vmul.f32 %v820, 1.442695
  %v1209 = vpow.pop %v1208
  %v1210 = vmul.f32 %v824, 1.442695
  %v1211 = vpow.pop %v1210
  %v1212 = vmul.f32 %v826, 1.442695
  %v1213 = vpow.pop %v1212
  %v1214 = vmul.f32 %v828, 1.442695
  %v1215 = vpow.pop %v1214
  %v1216 = vmul.f32 %v830, 1.442695
  %v1217 = vpow.pop %v1216
  %v1218 = vmul.f32 %v834, 1.442695
  %v1219 = vpow.pop %v1218
  %v1220 = vmul.f32 %v836, 1.442695
  %v1221 = vpow.pop %v1220
  %v1222 = vmul.f32 %v838, 1.442695
  %v1223 = vpow.pop %v1222
  %v1224 = vmul.f32 %v840, 1.442695
  %v1225 = vpow.pop %v1224
  %v1226 = vadd.f32 %v842, %v971
  %v1227 = vadd.f32 %v843, %v973
  %v1228 = vadd.f32 %v844, %v975
  %v1229 = vadd.f32 %v845, %v977
  %v1230 = vadd.f32 %v846, %v979
  %v1231 = vadd.f32 %v847, %v981
  %v1232 = vadd.f32 %v848, %v983
  %v1233 = vadd.f32 %v849, %v985
  %v1234 = vadd.f32 %v850, %v987
  %v1235 = vadd.f32 %v851, %v989
  %v1236 = vadd.f32 %v852, %v991
  %v1237 = vadd.f32 %v853, %v993
  %v1238 = vadd.f32 %v854, %v995
  %v1239 = vadd.f32 %v855, %v997
  %v1240 = vadd.f32 %v856, %v999
  %v1241 = vadd.f32 %v857, %v1001
  %v1242 = vadd.f32 %v858, %v1003
  %v1243 = vadd.f32 %v859, %v1005
  %v1244 = vadd.f32 %v860, %v1007
  %v1245 = vadd.f32 %v861, %v1009
  %v1246 = vadd.f32 %v862, %v1011
  %v1247 = vadd.f32 %v863, %v1013
  %v1248 = vadd.f32 %v864, %v1015
  %v1249 = vadd.f32 %v865, %v1017
  %v1250 = vadd.f32 %v866, %v1019
  %v1251 = vadd.f32 %v867, %v1021
  %v1252 = vadd.f32 %v868, %v1023
  %v1253 = vadd.f32 %v869, %v1025
  %v1254 = vadd.f32 %v870, %v1027
  %v1255 = vadd.f32 %v871, %v1029
  %v1256 = vadd.f32 %v872, %v1031
  %v1257 = vadd.f32 %v873, %v1033
  %v1258 = vadd.f32 %v874, %v1035
  %v1259 = vadd.f32 %v875, %v1037
  %v1260 = vadd.f32 %v876, %v1039
  %v1261 = vadd.f32 %v877, %v1041
  %v1262 = vadd.f32 %v878, %v1043
  %v1263 = vadd.f32 %v879, %v1045
  %v1264 = vadd.f32 %v880, %v1047
  %v1265 = vadd.f32 %v881, %v1049
  %v1266 = vadd.f32 %v882, %v1051
  %v1267 = vadd.f32 %v883, %v1053
  %v1268 = vadd.f32 %v884, %v1055
  %v1269 = vadd.f32 %v885, %v1057
  %v1270 = vadd.f32 %v886, %v1059
  %v1271 = vadd.f32 %v887, %v1061
  %v1272 = vadd.f32 %v888, %v1063
  %v1273 = vadd.f32 %v889, %v1065
  %v1274 = vadd.f32 %v890, %v1067
  %v1275 = vadd.f32 %v891, %v1069
  %v1276 = vadd.f32 %v892, %v1071
  %v1277 = vadd.f32 %v893, %v1073
  %v1278 = vadd.f32 %v894, %v1075
  %v1279 = vadd.f32 %v895, %v1077
  %v1280 = vadd.f32 %v896, %v1079
  %v1281 = vadd.f32 %v897, %v1081
  %v1282 = vadd.f32 %v898, %v1083
  %v1283 = vadd.f32 %v899, %v1085
  %v1284 = vadd.f32 %v900, %v1087
  %v1285 = vadd.f32 %v901, %v1089
  %v1286 = vadd.f32 %v902, %v1091
  %v1287 = vadd.f32 %v903, %v1093
  %v1288 = vadd.f32 %v904, %v1095
  %v1289 = vadd.f32 %v905, %v1097
  %v1290 = vadd.f32 %v906, %v1099
  %v1291 = vadd.f32 %v907, %v1101
  %v1292 = vadd.f32 %v908, %v1103
  %v1293 = vadd.f32 %v909, %v1105
  %v1294 = vadd.f32 %v910, %v1107
  %v1295 = vadd.f32 %v911, %v1109
  %v1296 = vadd.f32 %v912, %v1111
  %v1297 = vadd.f32 %v913, %v1113
  %v1298 = vadd.f32 %v914, %v1115
  %v1299 = vadd.f32 %v915, %v1117
  %v1300 = vadd.f32 %v916, %v1119
  %v1301 = vadd.f32 %v917, %v1121
  %v1302 = vadd.f32 %v918, %v1123
  %v1303 = vadd.f32 %v919, %v1125
  %v1304 = vadd.f32 %v920, %v1127
  %v1305 = vadd.f32 %v921, %v1129
  %v1306 = vadd.f32 %v922, %v1131
  %v1307 = vadd.f32 %v923, %v1133
  %v1308 = vadd.f32 %v924, %v1135
  %v1309 = vadd.f32 %v925, %v1137
  %v1310 = vadd.f32 %v926, %v1139
  %v1311 = vadd.f32 %v927, %v1141
  %v1312 = vadd.f32 %v928, %v1143
  %v1313 = vadd.f32 %v929, %v1145
  %v1314 = vadd.f32 %v930, %v1147
  %v1315 = vadd.f32 %v931, %v1149
  %v1316 = vadd.f32 %v932, %v1151
  %v1317 = vadd.f32 %v933, %v1153
  %v1318 = vadd.f32 %v934, %v1155
  %v1319 = vadd.f32 %v935, %v1157
  %v1320 = vadd.f32 %v936, %v1159
  %v1321 = vadd.f32 %v937, %v1161
  %v1322 = vadd.f32 %v938, %v1163
  %v1323 = vadd.f32 %v939, %v1165
  %v1324 = vadd.f32 %v940, %v1167
  %v1325 = vadd.f32 %v941, %v1169
  %v1326 = vadd.f32 %v942, %v1171
  %v1327 = vadd.f32 %v943, %v1173
  %v1328 = vadd.f32 %v944, %v1175
  %v1329 = vadd.f32 %v945, %v1177
  %v1330 = vadd.f32 %v946, %v1179
  %v1331 = vadd.f32 %v947, %v1181
  %v1332 = vadd.f32 %v948, %v1183
  %v1333 = vadd.f32 %v949, %v1185
  %v1334 = vadd.f32 %v950, %v1187
  %v1335 = vadd.f32 %v951, %v1189
  %v1336 = vadd.f32 %v952, %v1191
  %v1337 = vadd.f32 %v953, %v1193
  %v1338 = vadd.f32 %v954, %v1195
  %v1339 = vadd.f32 %v955, %v1197
  %v1340 = vadd.f32 %v956, %v1199
  %v1341 = vadd.f32 %v957, %v1201
  %v1342 = vadd.f32 %v958, %v1203
  %v1343 = vadd.f32 %v959, %v1205
  %v1344 = vadd.f32 %v960, %v1207
  %v1345 = vadd.f32 %v961, %v1209
  %v1346 = vadd.f32 %v962, %v1211
  %v1347 = vadd.f32 %v963, %v1213
  %v1348 = vadd.f32 %v964, %v1215
  %v1349 = vadd.f32 %v965, %v1217
  %v1350 = vadd.f32 %v966, %v1219
  %v1351 = vadd.f32 %v967, %v1221
  %v1352 = vadd.f32 %v968, %v1223
  %v1353 = vadd.f32 %v969, %v1225
  %1354 = vst [vmem:[#allocation2] sm:$0xff] %v1226
  %1355 = vst [vmem:[#allocation2 + $0x8] sm:$0xff] %v1227
  %1356 = vst [vmem:[#allocation2 + $0x10] sm:$0xff] %v1228
  %1357 = vst [vmem:[#allocation2 + $0x18] sm:$0xff] %v1229
  %1358 = vst [vmem:[#allocation2 + $0x20] sm:$0xff] %v1230
  %1359 = vst [vmem:[#allocation2 + $0x28] sm:$0xff] %v1231
  %1360 = vst [vmem:[#allocation2 + $0x30] sm:$0xff] %v1232
  %1361 = vst [vmem:[#allocation2 + $0x38] sm:$0xff] %v1233
  %1362 = vst [vmem:[#allocation2 + $0x40] sm:$0xff] %v1234
  %1363 = vst [vmem:[#allocation2 + $0x48] sm:$0xff] %v1235
  %1364 = vst [vmem:[#allocation2 + $0x50] sm:$0xff] %v1236
  %1365 = vst [vmem:[#allocation2 + $0x58] sm:$0xff] %v1237
  %1366 = vst [vmem:[#allocation2 + $0x60] sm:$0xff] %v1238
  %1367 = vst [vmem:[#allocation2 + $0x68] sm:$0xff] %v1239
  %1368 = vst [vmem:[#allocation2 + $0x70] sm:$0xff] %v1240
  %1369 = vst [vmem:[#allocation2 + $0x78] sm:$0xff] %v1241
  %1370 = vst [vmem:[#allocation2 + $0x80] sm:$0xff] %v1242
  %1371 = vst [vmem:[#allocation2 + $0x88] sm:$0xff] %v1243
  %1372 = vst [vmem:[#allocation2 + $0x90] sm:$0xff] %v1244
  %1373 = vst [vmem:[#allocation2 + $0x98] sm:$0xff] %v1245
  %1374 = vst [vmem:[#allocation2 + $0xa0] sm:$0xff] %v1246
  %1375 = vst [vmem:[#allocation2 + $0xa8] sm:$0xff] %v1247
  %1376 = vst [vmem:[#allocation2 + $0xb0] sm:$0xff] %v1248
  %1377 = vst [vmem:[#allocation2 + $0xb8] sm:$0xff] %v1249
  %1378 = vst [vmem:[#allocation2 + $0xc0] sm:$0xff] %v1250
  %1379 = vst [vmem:[#allocation2 + $0xc8] sm:$0xff] %v1251
  %1380 = vst [vmem:[#allocation2 + $0xd0] sm:$0xff] %v1252
  %1381 = vst [vmem:[#allocation2 + $0xd8] sm:$0xff] %v1253
  %1382 = vst [vmem:[#allocation2 + $0xe0] sm:$0xff] %v1254
  %1383 = vst [vmem:[#allocation2 + $0xe8] sm:$0xff] %v1255
  %1384 = vst [vmem:[#allocation2 + $0xf0] sm:$0xff] %v1256
  %1385 = vst [vmem:[#allocation2 + $0xf8] sm:$0xff] %v1257
  %1386 = vst [vmem:[#allocation2 + $0x100] sm:$0xff] %v1258
  %1387 = vst [vmem:[#allocation2 + $0x108] sm:$0xff] %v1259
  %1388 = vst [vmem:[#allocation2 + $0x110] sm:$0xff] %v1260
  %1389 = vst [vmem:[#allocation2 + $0x118] sm:$0xff] %v1261
  %1390 = vst [vmem:[#allocation2 + $0x120] sm:$0xff] %v1262
  %1391 = vst [vmem:[#allocation2 + $0x128] sm:$0xff] %v1263
  %1392 = vst [vmem:[#allocation2 + $0x130] sm:$0xff] %v1264
  %1393 = vst [vmem:[#allocation2 + $0x138] sm:$0xff] %v1265
  %1394 = vst [vmem:[#allocation2 + $0x140] sm:$0xff] %v1266
  %1395 = vst [vmem:[#allocation2 + $0x148] sm:$0xff] %v1267
  %1396 = vst [vmem:[#allocation2 + $0x150] sm:$0xff] %v1268
  %1397 = vst [vmem:[#allocation2 + $0x158] sm:$0xff] %v1269
  %1398 = vst [vmem:[#allocation2 + $0x160] sm:$0xff] %v1270
  %1399 = vst [vmem:[#allocation2 + $0x168] sm:$0xff] %v1271
  %1400 = vst [vmem:[#allocation2 + $0x170] sm:$0xff] %v1272
  %1401 = vst [vmem:[#allocation2 + $0x178] sm:$0xff] %v1273
  %1402 = vst [vmem:[#allocation2 + $0x180] sm:$0xff] %v1274
  %1403 = vst [vmem:[#allocation2 + $0x188] sm:$0xff] %v1275
  %1404 = vst [vmem:[#allocation2 + $0x190] sm:$0xff] %v1276
  %1405 = vst [vmem:[#allocation2 + $0x198] sm:$0xff] %v1277
  %1406 = vst [vmem:[#allocation2 + $0x1a0] sm:$0xff] %v1278
  %1407 = vst [vmem:[#allocation2 + $0x1a8] sm:$0xff] %v1279
  %1408 = vst [vmem:[#allocation2 + $0x1b0] sm:$0xff] %v1280
  %1409 = vst [vmem:[#allocation2 + $0x1b8] sm:$0xff] %v1281
  %1410 = vst [vmem:[#allocation2 + $0x1c0] sm:$0xff] %v1282
  %1411 = vst [vmem:[#allocation2 + $0x1c8] sm:$0xff] %v1283
  %1412 = vst [vmem:[#allocation2 + $0x1d0] sm:$0xff] %v1284
  %1413 = vst [vmem:[#allocation2 + $0x1d8] sm:$0xff] %v1285
  %1414 = vst [vmem:[#allocation2 + $0x1e0] sm:$0xff] %v1286
  %1415 = vst [vmem:[#allocation2 + $0x1e8] sm:$0xff] %v1287
  %1416 = vst [vmem:[#allocation2 + $0x1f0] sm:$0xff] %v1288
  %1417 = vst [vmem:[#allocation2 + $0x1f8] sm:$0xff] %v1289
  %1418 = vst [vmem:[#allocation2 + $0x200] sm:$0xff] %v1290
  %1419 = vst [vmem:[#allocation2 + $0x208] sm:$0xff] %v1291
  %1420 = vst [vmem:[#allocation2 + $0x210] sm:$0xff] %v1292
  %1421 = vst [vmem:[#allocation2 + $0x218] sm:$0xff] %v1293
  %1422 = vst [vmem:[#allocation2 + $0x220] sm:$0xff] %v1294
  %1423 = vst [vmem:[#allocation2 + $0x228] sm:$0xff] %v1295
  %1424 = vst [vmem:[#allocation2 + $0x230] sm:$0xff] %v1296
  %1425 = vst [vmem:[#allocation2 + $0x238] sm:$0xff] %v1297
  %1426 = vst [vmem:[#allocation2 + $0x240] sm:$0xff] %v1298
  %1427 = vst [vmem:[#allocation2 + $0x248] sm:$0xff] %v1299
  %1428 = vst [vmem:[#allocation2 + $0x250] sm:$0xff] %v1300
  %1429 = vst [vmem:[#allocation2 + $0x258] sm:$0xff] %v1301
  %1430 = vst [vmem:[#allocation2 + $0x260] sm:$0xff] %v1302
  %1431 = vst [vmem:[#allocation2 + $0x268] sm:$0xff] %v1303
  %1432 = vst [vmem:[#allocation2 + $0x270] sm:$0xff] %v1304
  %1433 = vst [vmem:[#allocation2 + $0x278] sm:$0xff] %v1305
  %1434 = vst [vmem:[#allocation2 + $0x280] sm:$0xff] %v1306
  %1435 = vst [vmem:[#allocation2 + $0x288] sm:$0xff] %v1307
  %1436 = vst [vmem:[#allocation2 + $0x290] sm:$0xff] %v1308
  %1437 = vst [vmem:[#allocation2 + $0x298] sm:$0xff] %v1309
  %1438 = vst [vmem:[#allocation2 + $0x2a0] sm:$0xff] %v1310
  %1439 = vst [vmem:[#allocation2 + $0x2a8] sm:$0xff] %v1311
  %1440 = vst [vmem:[#allocation2 + $0x2b0] sm:$0xff] %v1312
  %1441 = vst [vmem:[#allocation2 + $0x2b8] sm:$0xff] %v1313
  %1442 = vst [vmem:[#allocation2 + $0x2c0] sm:$0xff] %v1314
  %1443 = vst [vmem:[#allocation2 + $0x2c8] sm:$0xff] %v1315
  %1444 = vst [vmem:[#allocation2 + $0x2d0] sm:$0xff] %v1316
  %1445 = vst [vmem:[#allocation2 + $0x2d8] sm:$0xff] %v1317
  %1446 = vst [vmem:[#allocation2 + $0x2e0] sm:$0xff] %v1318
  %1447 = vst [vmem:[#allocation2 + $0x2e8] sm:$0xff] %v1319
  %1448 = vst [vmem:[#allocation2 + $0x2f0] sm:$0xff] %v1320
  %1449 = vst [vmem:[#allocation2 + $0x2f8] sm:$0xff] %v1321
  %1450 = vst [vmem:[#allocation2 + $0x300] sm:$0xff] %v1322
  %1451 = vst [vmem:[#allocation2 + $0x308] sm:$0xff] %v1323
  %1452 = vst [vmem:[#allocation2 + $0x310] sm:$0xff] %v1324
  %1453 = vst [vmem:[#allocation2 + $0x318] sm:$0xff] %v1325
  %1454 = vst [vmem:[#allocation2 + $0x320] sm:$0xff] %v1326
  %1455 = vst [vmem:[#allocation2 + $0x328] sm:$0xff] %v1327
  %1456 = vst [vmem:[#allocation2 + $0x330] sm:$0xff] %v1328
  %1457 = vst [vmem:[#allocation2 + $0x338] sm:$0xff] %v1329
  %1458 = vst [vmem:[#allocation2 + $0x340] sm:$0xff] %v1330
  %1459 = vst [vmem:[#allocation2 + $0x348] sm:$0xff] %v1331
  %1460 = vst [vmem:[#allocation2 + $0x350] sm:$0xff] %v1332
  %1461 = vst [vmem:[#allocation2 + $0x358] sm:$0xff] %v1333
  %1462 = vst [vmem:[#allocation2 + $0x360] sm:$0xff] %v1334
  %1463 = vst [vmem:[#allocation2 + $0x368] sm:$0xff] %v1335
  %1464 = vst [vmem:[#allocation2 + $0x370] sm:$0xff] %v1336
  %1465 = vst [vmem:[#allocation2 + $0x378] sm:$0xff] %v1337
  %1466 = vst [vmem:[#allocation2 + $0x380] sm:$0xff] %v1338
  %1467 = vst [vmem:[#allocation2 + $0x388] sm:$0xff] %v1339
  %1468 = vst [vmem:[#allocation2 + $0x390] sm:$0xff] %v1340
  %1469 = vst [vmem:[#allocation2 + $0x398] sm:$0xff] %v1341
  %1470 = vst [vmem:[#allocation2 + $0x3a0] sm:$0xff] %v1342
  %1471 = vst [vmem:[#allocation2 + $0x3a8] sm:$0xff] %v1343
  %1472 = vst [vmem:[#allocation2 + $0x3b0] sm:$0xff] %v1344
  %1473 = vst [vmem:[#allocation2 + $0x3b8] sm:$0xff] %v1345
  %1474 = vst [vmem:[#allocation2 + $0x3c0] sm:$0xff] %v1346
  %1475 = vst [vmem:[#allocation2 + $0x3c8] sm:$0xff] %v1347
  %1476 = vst [vmem:[#allocation2 + $0x3d0] sm:$0xff] %v1348
  %1477 = vst [vmem:[#allocation2 + $0x3d8] sm:$0xff] %v1349
  %1478 = vst [vmem:[#allocation2 + $0x3e0] sm:$0xff] %v1350
  %1479 = vst [vmem:[#allocation2 + $0x3e8] sm:$0xff] %v1351
  %1480 = vst [vmem:[#allocation2 + $0x3f0] sm:$0xff] %v1352
  %1481 = vst [vmem:[#allocation2 + $0x3f8] sm:$0xff] %v1353
  // Predicated region
  $region14: #{tpu_custom_call.1} parent=0 // pred_check
    %p1482 = pneg %p12
  $region15: #{tpu_custom_call.1} parent=0 // pred_check_branch
    %1484 = sbr.rel (%p1482) target = $region17
  $region16: #{tpu_custom_call.1} parent=0 // pred_region
    %v1485 = vld [vmem:[#allocation2] sm:$0xff]
    %v1486 = vld [vmem:[#allocation2 + $0x8] sm:$0xff]
    %v1487 = vld [vmem:[#allocation2 + $0x10] sm:$0xff]
    %v1488 = vld [vmem:[#allocation2 + $0x18] sm:$0xff]
    %v1489 = vld [vmem:[#allocation2 + $0x20] sm:$0xff]
    %v1490 = vld [vmem:[#allocation2 + $0x28] sm:$0xff]
    %v1491 = vld [vmem:[#allocation2 + $0x30] sm:$0xff]
    %v1492 = vld [vmem:[#allocation2 + $0x38] sm:$0xff]
    %v1493 = vld [vmem:[#allocation2 + $0x40] sm:$0xff]
    %v1494 = vld [vmem:[#allocation2 + $0x48] sm:$0xff]
    %v1495 = vld [vmem:[#allocation2 + $0x50] sm:$0xff]
    %v1496 = vld [vmem:[#allocation2 + $0x58] sm:$0xff]
    %v1497 = vld [vmem:[#allocation2 + $0x60] sm:$0xff]
    %v1498 = vld [vmem:[#allocation2 + $0x68] sm:$0xff]
    %v1499 = vld [vmem:[#allocation2 + $0x70] sm:$0xff]
    %v1500 = vld [vmem:[#allocation2 + $0x78] sm:$0xff]
    %v1501 = vld [vmem:[#allocation2 + $0x80] sm:$0xff]
    %v1502 = vld [vmem:[#allocation2 + $0x88] sm:$0xff]
    %v1503 = vld [vmem:[#allocation2 + $0x90] sm:$0xff]
    %v1504 = vld [vmem:[#allocation2 + $0x98] sm:$0xff]
    %v1505 = vld [vmem:[#allocation2 + $0xa0] sm:$0xff]
    %v1506 = vld [vmem:[#allocation2 + $0xa8] sm:$0xff]
    %v1507 = vld [vmem:[#allocation2 + $0xb0] sm:$0xff]
    %v1508 = vld [vmem:[#allocation2 + $0xb8] sm:$0xff]
    %v1509 = vld [vmem:[#allocation2 + $0xc0] sm:$0xff]
    %v1510 = vld [vmem:[#allocation2 + $0xc8] sm:$0xff]
    %v1511 = vld [vmem:[#allocation2 + $0xd0] sm:$0xff]
    %v1512 = vld [vmem:[#allocation2 + $0xd8] sm:$0xff]
    %v1513 = vld [vmem:[#allocation2 + $0xe0] sm:$0xff]
    %v1514 = vld [vmem:[#allocation2 + $0xe8] sm:$0xff]
    %v1515 = vld [vmem:[#allocation2 + $0xf0] sm:$0xff]
    %v1516 = vld [vmem:[#allocation2 + $0xf8] sm:$0xff]
    %v1517 = vld [vmem:[#allocation2 + $0x100] sm:$0xff]
    %v1518 = vld [vmem:[#allocation2 + $0x108] sm:$0xff]
    %v1519 = vld [vmem:[#allocation2 + $0x110] sm:$0xff]
    %v1520 = vld [vmem:[#allocation2 + $0x118] sm:$0xff]
    %v1521 = vld [vmem:[#allocation2 + $0x120] sm:$0xff]
    %v1522 = vld [vmem:[#allocation2 + $0x128] sm:$0xff]
    %v1523 = vld [vmem:[#allocation2 + $0x130] sm:$0xff]
    %v1524 = vld [vmem:[#allocation2 + $0x138] sm:$0xff]
    %v1525 = vld [vmem:[#allocation2 + $0x140] sm:$0xff]
    %v1526 = vld [vmem:[#allocation2 + $0x148] sm:$0xff]
    %v1527 = vld [vmem:[#allocation2 + $0x150] sm:$0xff]
    %v1528 = vld [vmem:[#allocation2 + $0x158] sm:$0xff]
    %v1529 = vld [vmem:[#allocation2 + $0x160] sm:$0xff]
    %v1530 = vld [vmem:[#allocation2 + $0x168] sm:$0xff]
    %v1531 = vld [vmem:[#allocation2 + $0x170] sm:$0xff]
    %v1532 = vld [vmem:[#allocation2 + $0x178] sm:$0xff]
    %v1533 = vld [vmem:[#allocation2 + $0x180] sm:$0xff]
    %v1534 = vld [vmem:[#allocation2 + $0x188] sm:$0xff]
    %v1535 = vld [vmem:[#allocation2 + $0x190] sm:$0xff]
    %v1536 = vld [vmem:[#allocation2 + $0x198] sm:$0xff]
    %v1537 = vld [vmem:[#allocation2 + $0x1a0] sm:$0xff]
    %v1538 = vld [vmem:[#allocation2 + $0x1a8] sm:$0xff]
    %v1539 = vld [vmem:[#allocation2 + $0x1b0] sm:$0xff]
    %v1540 = vld [vmem:[#allocation2 + $0x1b8] sm:$0xff]
    %v1541 = vld [vmem:[#allocation2 + $0x1c0] sm:$0xff]
    %v1542 = vld [vmem:[#allocation2 + $0x1c8] sm:$0xff]
    %v1543 = vld [vmem:[#allocation2 + $0x1d0] sm:$0xff]
    %v1544 = vld [vmem:[#allocation2 + $0x1d8] sm:$0xff]
    %v1545 = vld [vmem:[#allocation2 + $0x1e0] sm:$0xff]
    %v1546 = vld [vmem:[#allocation2 + $0x1e8] sm:$0xff]
    %v1547 = vld [vmem:[#allocation2 + $0x1f0] sm:$0xff]
    %v1548 = vld [vmem:[#allocation2 + $0x1f8] sm:$0xff]
    %v1549 = vld [vmem:[#allocation2 + $0x200] sm:$0xff]
    %v1550 = vld [vmem:[#allocation2 + $0x208] sm:$0xff]
    %v1551 = vld [vmem:[#allocation2 + $0x210] sm:$0xff]
    %v1552 = vld [vmem:[#allocation2 + $0x218] sm:$0xff]
    %v1553 = vld [vmem:[#allocation2 + $0x220] sm:$0xff]
    %v1554 = vld [vmem:[#allocation2 + $0x228] sm:$0xff]
    %v1555 = vld [vmem:[#allocation2 + $0x230] sm:$0xff]
    %v1556 = vld [vmem:[#allocation2 + $0x238] sm:$0xff]
    %v1557 = vld [vmem:[#allocation2 + $0x240] sm:$0xff]
    %v1558 = vld [vmem:[#allocation2 + $0x248] sm:$0xff]
    %v1559 = vld [vmem:[#allocation2 + $0x250] sm:$0xff]
    %v1560 = vld [vmem:[#allocation2 + $0x258] sm:$0xff]
    %v1561 = vld [vmem:[#allocation2 + $0x260] sm:$0xff]
    %v1562 = vld [vmem:[#allocation2 + $0x268] sm:$0xff]
    %v1563 = vld [vmem:[#allocation2 + $0x270] sm:$0xff]
    %v1564 = vld [vmem:[#allocation2 + $0x278] sm:$0xff]
    %v1565 = vld [vmem:[#allocation2 + $0x280] sm:$0xff]
    %v1566 = vld [vmem:[#allocation2 + $0x288] sm:$0xff]
    %v1567 = vld [vmem:[#allocation2 + $0x290] sm:$0xff]
    %v1568 = vld [vmem:[#allocation2 + $0x298] sm:$0xff]
    %v1569 = vld [vmem:[#allocation2 + $0x2a0] sm:$0xff]
    %v1570 = vld [vmem:[#allocation2 + $0x2a8] sm:$0xff]
    %v1571 = vld [vmem:[#allocation2 + $0x2b0] sm:$0xff]
    %v1572 = vld [vmem:[#allocation2 + $0x2b8] sm:$0xff]
    %v1573 = vld [vmem:[#allocation2 + $0x2c0] sm:$0xff]
    %v1574 = vld [vmem:[#allocation2 + $0x2c8] sm:$0xff]
    %v1575 = vld [vmem:[#allocation2 + $0x2d0] sm:$0xff]
    %v1576 = vld [vmem:[#allocation2 + $0x2d8] sm:$0xff]
    %v1577 = vld [vmem:[#allocation2 + $0x2e0] sm:$0xff]
    %v1578 = vld [vmem:[#allocation2 + $0x2e8] sm:$0xff]
    %v1579 = vld [vmem:[#allocation2 + $0x2f0] sm:$0xff]
    %v1580 = vld [vmem:[#allocation2 + $0x2f8] sm:$0xff]
    %v1581 = vld [vmem:[#allocation2 + $0x300] sm:$0xff]
    %v1582 = vld [vmem:[#allocation2 + $0x308] sm:$0xff]
    %v1583 = vld [vmem:[#allocation2 + $0x310] sm:$0xff]
    %v1584 = vld [vmem:[#allocation2 + $0x318] sm:$0xff]
    %v1585 = vld [vmem:[#allocation2 + $0x320] sm:$0xff]
    %v1586 = vld [vmem:[#allocation2 + $0x328] sm:$0xff]
    %v1587 = vld [vmem:[#allocation2 + $0x330] sm:$0xff]
    %v1588 = vld [vmem:[#allocation2 + $0x338] sm:$0xff]
    %v1589 = vld [vmem:[#allocation2 + $0x340] sm:$0xff]
    %v1590 = vld [vmem:[#allocation2 + $0x348] sm:$0xff]
    %v1591 = vld [vmem:[#allocation2 + $0x350] sm:$0xff]
    %v1592 = vld [vmem:[#allocation2 + $0x358] sm:$0xff]
    %v1593 = vld [vmem:[#allocation2 + $0x360] sm:$0xff]
    %v1594 = vld [vmem:[#allocation2 + $0x368] sm:$0xff]
    %v1595 = vld [vmem:[#allocation2 + $0x370] sm:$0xff]
    %v1596 = vld [vmem:[#allocation2 + $0x378] sm:$0xff]
    %v1597 = vld [vmem:[#allocation2 + $0x380] sm:$0xff]
    %v1598 = vld [vmem:[#allocation2 + $0x388] sm:$0xff]
    %v1599 = vld [vmem:[#allocation2 + $0x390] sm:$0xff]
    %v1600 = vld [vmem:[#allocation2 + $0x398] sm:$0xff]
    %v1601 = vld [vmem:[#allocation2 + $0x3a0] sm:$0xff]
    %v1602 = vld [vmem:[#allocation2 + $0x3a8] sm:$0xff]
    %v1603 = vld [vmem:[#allocation2 + $0x3b0] sm:$0xff]
    %v1604 = vld [vmem:[#allocation2 + $0x3b8] sm:$0xff]
    %v1605 = vld [vmem:[#allocation2 + $0x3c0] sm:$0xff]
    %v1606 = vld [vmem:[#allocation2 + $0x3c8] sm:$0xff]
    %v1607 = vld [vmem:[#allocation2 + $0x3d0] sm:$0xff]
    %v1608 = vld [vmem:[#allocation2 + $0x3d8] sm:$0xff]
    %v1609 = vld [vmem:[#allocation2 + $0x3e0] sm:$0xff]
    %v1610 = vld [vmem:[#allocation2 + $0x3e8] sm:$0xff]
    %v1611 = vld [vmem:[#allocation2 + $0x3f0] sm:$0xff]
    %v1612 = vld [vmem:[#allocation2 + $0x3f8] sm:$0xff]
    %v1613 = vadd.f32 %v1485, %v1486
    %1614 = vadd.xlane.f32.xlu0 %v1613
    %v1615 = vpop.xlane.xlu0 %1614
    %v1616 = vadd.f32 %v1487, %v1488
    %1617 = vadd.xlane.f32.xlu0 %v1616
    %v1618 = vpop.xlane.xlu0 %1617
    %v1619 = vadd.f32 %v1489, %v1490
    %1620 = vadd.xlane.f32.xlu0 %v1619
    %v1621 = vpop.xlane.xlu0 %1620
    %v1622 = vadd.f32 %v1491, %v1492
    %1623 = vadd.xlane.f32.xlu0 %v1622
    %v1624 = vpop.xlane.xlu0 %1623
    %v1625 = vadd.f32 %v1493, %v1494
    %1626 = vadd.xlane.f32.xlu0 %v1625
    %v1627 = vpop.xlane.xlu0 %1626
    %v1628 = vadd.f32 %v1495, %v1496
    %1629 = vadd.xlane.f32.xlu0 %v1628
    %v1630 = vpop.xlane.xlu0 %1629
    %v1631 = vadd.f32 %v1497, %v1498
    %1632 = vadd.xlane.f32.xlu0 %v1631
    %v1633 = vpop.xlane.xlu0 %1632
    %v1634 = vadd.f32 %v1499, %v1500
    %1635 = vadd.xlane.f32.xlu0 %v1634
    %v1636 = vpop.xlane.xlu0 %1635
    %v1637 = vadd.f32 %v1501, %v1502
    %1638 = vadd.xlane.f32.xlu0 %v1637
    %v1639 = vpop.xlane.xlu0 %1638
    %v1640 = vadd.f32 %v1503, %v1504
    %1641 = vadd.xlane.f32.xlu0 %v1640
    %v1642 = vpop.xlane.xlu0 %1641
    %v1643 = vadd.f32 %v1505, %v1506
    %1644 = vadd.xlane.f32.xlu0 %v1643
    %v1645 = vpop.xlane.xlu0 %1644
    %v1646 = vadd.f32 %v1507, %v1508
    %1647 = vadd.xlane.f32.xlu0 %v1646
    %v1648 = vpop.xlane.xlu0 %1647
    %v1649 = vadd.f32 %v1509, %v1510
    %1650 = vadd.xlane.f32.xlu0 %v1649
    %v1651 = vpop.xlane.xlu0 %1650
    %v1652 = vadd.f32 %v1511, %v1512
    %1653 = vadd.xlane.f32.xlu0 %v1652
    %v1654 = vpop.xlane.xlu0 %1653
    %v1655 = vadd.f32 %v1513, %v1514
    %1656 = vadd.xlane.f32.xlu0 %v1655
    %v1657 = vpop.xlane.xlu0 %1656
    %v1658 = vadd.f32 %v1515, %v1516
    %1659 = vadd.xlane.f32.xlu0 %v1658
    %v1660 = vpop.xlane.xlu0 %1659
    %v1661 = vadd.f32 %v1517, %v1518
    %1662 = vadd.xlane.f32.xlu0 %v1661
    %v1663 = vpop.xlane.xlu0 %1662
    %v1664 = vadd.f32 %v1519, %v1520
    %1665 = vadd.xlane.f32.xlu0 %v1664
    %v1666 = vpop.xlane.xlu0 %1665
    %v1667 = vadd.f32 %v1521, %v1522
    %1668 = vadd.xlane.f32.xlu0 %v1667
    %v1669 = vpop.xlane.xlu0 %1668
    %v1670 = vadd.f32 %v1523, %v1524
    %1671 = vadd.xlane.f32.xlu0 %v1670
    %v1672 = vpop.xlane.xlu0 %1671
    %v1673 = vadd.f32 %v1525, %v1526
    %1674 = vadd.xlane.f32.xlu0 %v1673
    %v1675 = vpop.xlane.xlu0 %1674
    %v1676 = vadd.f32 %v1527, %v1528
    %1677 = vadd.xlane.f32.xlu0 %v1676
    %v1678 = vpop.xlane.xlu0 %1677
    %v1679 = vadd.f32 %v1529, %v1530
    %1680 = vadd.xlane.f32.xlu0 %v1679
    %v1681 = vpop.xlane.xlu0 %1680
    %v1682 = vadd.f32 %v1531, %v1532
    %1683 = vadd.xlane.f32.xlu0 %v1682
    %v1684 = vpop.xlane.xlu0 %1683
    %v1685 = vadd.f32 %v1533, %v1534
    %1686 = vadd.xlane.f32.xlu0 %v1685
    %v1687 = vpop.xlane.xlu0 %1686
    %v1688 = vadd.f32 %v1535, %v1536
    %1689 = vadd.xlane.f32.xlu0 %v1688
    %v1690 = vpop.xlane.xlu0 %1689
    %v1691 = vadd.f32 %v1537, %v1538
    %1692 = vadd.xlane.f32.xlu0 %v1691
    %v1693 = vpop.xlane.xlu0 %1692
    %v1694 = vadd.f32 %v1539, %v1540
    %1695 = vadd.xlane.f32.xlu0 %v1694
    %v1696 = vpop.xlane.xlu0 %1695
    %v1697 = vadd.f32 %v1541, %v1542
    %1698 = vadd.xlane.f32.xlu0 %v1697
    %v1699 = vpop.xlane.xlu0 %1698
    %v1700 = vadd.f32 %v1543, %v1544
    %1701 = vadd.xlane.f32.xlu0 %v1700
    %v1702 = vpop.xlane.xlu0 %1701
    %v1703 = vadd.f32 %v1545, %v1546
    %1704 = vadd.xlane.f32.xlu0 %v1703
    %v1705 = vpop.xlane.xlu0 %1704
    %v1706 = vadd.f32 %v1547, %v1548
    %1707 = vadd.xlane.f32.xlu0 %v1706
    %v1708 = vpop.xlane.xlu0 %1707
    %v1709 = vadd.f32 %v1549, %v1550
    %1710 = vadd.xlane.f32.xlu0 %v1709
    %v1711 = vpop.xlane.xlu0 %1710
    %v1712 = vadd.f32 %v1551, %v1552
    %1713 = vadd.xlane.f32.xlu0 %v1712
    %v1714 = vpop.xlane.xlu0 %1713
    %v1715 = vadd.f32 %v1553, %v1554
    %1716 = vadd.xlane.f32.xlu0 %v1715
    %v1717 = vpop.xlane.xlu0 %1716
    %v1718 = vadd.f32 %v1555, %v1556
    %1719 = vadd.xlane.f32.xlu0 %v1718
    %v1720 = vpop.xlane.xlu0 %1719
    %v1721 = vadd.f32 %v1557, %v1558
    %1722 = vadd.xlane.f32.xlu0 %v1721
    %v1723 = vpop.xlane.xlu0 %1722
    %v1724 = vadd.f32 %v1559, %v1560
    %1725 = vadd.xlane.f32.xlu0 %v1724
    %v1726 = vpop.xlane.xlu0 %1725
    %v1727 = vadd.f32 %v1561, %v1562
    %1728 = vadd.xlane.f32.xlu0 %v1727
    %v1729 = vpop.xlane.xlu0 %1728
    %v1730 = vadd.f32 %v1563, %v1564
    %1731 = vadd.xlane.f32.xlu0 %v1730
    %v1732 = vpop.xlane.xlu0 %1731
    %v1733 = vadd.f32 %v1565, %v1566
    %1734 = vadd.xlane.f32.xlu0 %v1733
    %v1735 = vpop.xlane.xlu0 %1734
    %v1736 = vadd.f32 %v1567, %v1568
    %1737 = vadd.xlane.f32.xlu0 %v1736
    %v1738 = vpop.xlane.xlu0 %1737
    %v1739 = vadd.f32 %v1569, %v1570
    %1740 = vadd.xlane.f32.xlu0 %v1739
    %v1741 = vpop.xlane.xlu0 %1740
    %v1742 = vadd.f32 %v1571, %v1572
    %1743 = vadd.xlane.f32.xlu0 %v1742
    %v1744 = vpop.xlane.xlu0 %1743
    %v1745 = vadd.f32 %v1573, %v1574
    %1746 = vadd.xlane.f32.xlu0 %v1745
    %v1747 = vpop.xlane.xlu0 %1746
    %v1748 = vadd.f32 %v1575, %v1576
    %1749 = vadd.xlane.f32.xlu0 %v1748
    %v1750 = vpop.xlane.xlu0 %1749
    %v1751 = vadd.f32 %v1577, %v1578
    %1752 = vadd.xlane.f32.xlu0 %v1751
    %v1753 = vpop.xlane.xlu0 %1752
    %v1754 = vadd.f32 %v1579, %v1580
    %1755 = vadd.xlane.f32.xlu0 %v1754
    %v1756 = vpop.xlane.xlu0 %1755
    %v1757 = vadd.f32 %v1581, %v1582
    %1758 = vadd.xlane.f32.xlu0 %v1757
    %v1759 = vpop.xlane.xlu0 %1758
    %v1760 = vadd.f32 %v1583, %v1584
    %1761 = vadd.xlane.f32.xlu0 %v1760
    %v1762 = vpop.xlane.xlu0 %1761
    %v1763 = vadd.f32 %v1585, %v1586
    %1764 = vadd.xlane.f32.xlu0 %v1763
    %v1765 = vpop.xlane.xlu0 %1764
    %v1766 = vadd.f32 %v1587, %v1588
    %1767 = vadd.xlane.f32.xlu0 %v1766
    %v1768 = vpop.xlane.xlu0 %1767
    %v1769 = vadd.f32 %v1589, %v1590
    %1770 = vadd.xlane.f32.xlu0 %v1769
    %v1771 = vpop.xlane.xlu0 %1770
    %v1772 = vadd.f32 %v1591, %v1592
    %1773 = vadd.xlane.f32.xlu0 %v1772
    %v1774 = vpop.xlane.xlu0 %1773
    %v1775 = vadd.f32 %v1593, %v1594
    %1776 = vadd.xlane.f32.xlu0 %v1775
    %v1777 = vpop.xlane.xlu0 %1776
    %v1778 = vadd.f32 %v1595, %v1596
    %1779 = vadd.xlane.f32.xlu0 %v1778
    %v1780 = vpop.xlane.xlu0 %1779
    %v1781 = vadd.f32 %v1597, %v1598
    %1782 = vadd.xlane.f32.xlu0 %v1781
    %v1783 = vpop.xlane.xlu0 %1782
    %v1784 = vadd.f32 %v1599, %v1600
    %1785 = vadd.xlane.f32.xlu0 %v1784
    %v1786 = vpop.xlane.xlu0 %1785
    %v1787 = vadd.f32 %v1601, %v1602
    %1788 = vadd.xlane.f32.xlu0 %v1787
    %v1789 = vpop.xlane.xlu0 %1788
    %v1790 = vadd.f32 %v1603, %v1604
    %1791 = vadd.xlane.f32.xlu0 %v1790
    %v1792 = vpop.xlane.xlu0 %1791
    %v1793 = vadd.f32 %v1605, %v1606
    %1794 = vadd.xlane.f32.xlu0 %v1793
    %v1795 = vpop.xlane.xlu0 %1794
    %v1796 = vadd.f32 %v1607, %v1608
    %1797 = vadd.xlane.f32.xlu0 %v1796
    %v1798 = vpop.xlane.xlu0 %1797
    %v1799 = vadd.f32 %v1609, %v1610
    %1800 = vadd.xlane.f32.xlu0 %v1799
    %v1801 = vpop.xlane.xlu0 %1800
    %v1802 = vadd.f32 %v1611, %v1612
    %1803 = vadd.xlane.f32.xlu0 %v1802
    %v1804 = vpop.xlane.xlu0 %1803
    %vm1805 = vcmask 7168
    %1806 = vst.msk [vmem:[%s2] sm:$0xff] %vm1805, %v1615
    %1807 = vst.msk [vmem:[%s2 + $0x8] sm:$0xff] %vm1805, %v1618
    %1808 = vst.msk [vmem:[%s2 + $0x10] sm:$0xff] %vm1805, %v1621
    %1809 = vst.msk [vmem:[%s2 + $0x18] sm:$0xff] %vm1805, %v1624
    %1810 = vst.msk [vmem:[%s2 + $0x20] sm:$0xff] %vm1805, %v1627
    %1811 = vst.msk [vmem:[%s2 + $0x28] sm:$0xff] %vm1805, %v1630
    %1812 = vst.msk [vmem:[%s2 + $0x30] sm:$0xff] %vm1805, %v1633
    %1813 = vst.msk [vmem:[%s2 + $0x38] sm:$0xff] %vm1805, %v1636
    %1814 = vst.msk [vmem:[%s2 + $0x40] sm:$0xff] %vm1805, %v1639
    %1815 = vst.msk [vmem:[%s2 + $0x48] sm:$0xff] %vm1805, %v1642
    %1816 = vst.msk [vmem:[%s2 + $0x50] sm:$0xff] %vm1805, %v1645
    %1817 = vst.msk [vmem:[%s2 + $0x58] sm:$0xff] %vm1805, %v1648
    %1818 = vst.msk [vmem:[%s2 + $0x60] sm:$0xff] %vm1805, %v1651
    %1819 = vst.msk [vmem:[%s2 + $0x68] sm:$0xff] %vm1805, %v1654
    %1820 = vst.msk [vmem:[%s2 + $0x70] sm:$0xff] %vm1805, %v1657
    %1821 = vst.msk [vmem:[%s2 + $0x78] sm:$0xff] %vm1805, %v1660
    %1822 = vst.msk [vmem:[%s2 + $0x80] sm:$0xff] %vm1805, %v1663
    %1823 = vst.msk [vmem:[%s2 + $0x88] sm:$0xff] %vm1805, %v1666
    %1824 = vst.msk [vmem:[%s2 + $0x90] sm:$0xff] %vm1805, %v1669
    %1825 = vst.msk [vmem:[%s2 + $0x98] sm:$0xff] %vm1805, %v1672
    %1826 = vst.msk [vmem:[%s2 + $0xa0] sm:$0xff] %vm1805, %v1675
    %1827 = vst.msk [vmem:[%s2 + $0xa8] sm:$0xff] %vm1805, %v1678
    %1828 = vst.msk [vmem:[%s2 + $0xb0] sm:$0xff] %vm1805, %v1681
    %1829 = vst.msk [vmem:[%s2 + $0xb8] sm:$0xff] %vm1805, %v1684
    %1830 = vst.msk [vmem:[%s2 + $0xc0] sm:$0xff] %vm1805, %v1687
    %1831 = vst.msk [vmem:[%s2 + $0xc8] sm:$0xff] %vm1805, %v1690
    %1832 = vst.msk [vmem:[%s2 + $0xd0] sm:$0xff] %vm1805, %v1693
    %1833 = vst.msk [vmem:[%s2 + $0xd8] sm:$0xff] %vm1805, %v1696
    %1834 = vst.msk [vmem:[%s2 + $0xe0] sm:$0xff] %vm1805, %v1699
    %1835 = vst.msk [vmem:[%s2 + $0xe8] sm:$0xff] %vm1805, %v1702
    %1836 = vst.msk [vmem:[%s2 + $0xf0] sm:$0xff] %vm1805, %v1705
    %1837 = vst.msk [vmem:[%s2 + $0xf8] sm:$0xff] %vm1805, %v1708
    %1838 = vst.msk [vmem:[%s2 + $0x100] sm:$0xff] %vm1805, %v1711
    %1839 = vst.msk [vmem:[%s2 + $0x108] sm:$0xff] %vm1805, %v1714
    %1840 = vst.msk [vmem:[%s2 + $0x110] sm:$0xff] %vm1805, %v1717
    %1841 = vst.msk [vmem:[%s2 + $0x118] sm:$0xff] %vm1805, %v1720
    %1842 = vst.msk [vmem:[%s2 + $0x120] sm:$0xff] %vm1805, %v1723
    %1843 = vst.msk [vmem:[%s2 + $0x128] sm:$0xff] %vm1805, %v1726
    %1844 = vst.msk [vmem:[%s2 + $0x130] sm:$0xff] %vm1805, %v1729
    %1845 = vst.msk [vmem:[%s2 + $0x138] sm:$0xff] %vm1805, %v1732
    %1846 = vst.msk [vmem:[%s2 + $0x140] sm:$0xff] %vm1805, %v1735
    %1847 = vst.msk [vmem:[%s2 + $0x148] sm:$0xff] %vm1805, %v1738
    %1848 = vst.msk [vmem:[%s2 + $0x150] sm:$0xff] %vm1805, %v1741
    %1849 = vst.msk [vmem:[%s2 + $0x158] sm:$0xff] %vm1805, %v1744
    %1850 = vst.msk [vmem:[%s2 + $0x160] sm:$0xff] %vm1805, %v1747
    %1851 = vst.msk [vmem:[%s2 + $0x168] sm:$0xff] %vm1805, %v1750
    %1852 = vst.msk [vmem:[%s2 + $0x170] sm:$0xff] %vm1805, %v1753
    %1853 = vst.msk [vmem:[%s2 + $0x178] sm:$0xff] %vm1805, %v1756
    %1854 = vst.msk [vmem:[%s2 + $0x180] sm:$0xff] %vm1805, %v1759
    %1855 = vst.msk [vmem:[%s2 + $0x188] sm:$0xff] %vm1805, %v1762
    %1856 = vst.msk [vmem:[%s2 + $0x190] sm:$0xff] %vm1805, %v1765
    %1857 = vst.msk [vmem:[%s2 + $0x198] sm:$0xff] %vm1805, %v1768
    %1858 = vst.msk [vmem:[%s2 + $0x1a0] sm:$0xff] %vm1805, %v1771
    %1859 = vst.msk [vmem:[%s2 + $0x1a8] sm:$0xff] %vm1805, %v1774
    %1860 = vst.msk [vmem:[%s2 + $0x1b0] sm:$0xff] %vm1805, %v1777
    %1861 = vst.msk [vmem:[%s2 + $0x1b8] sm:$0xff] %vm1805, %v1780
    %1862 = vst.msk [vmem:[%s2 + $0x1c0] sm:$0xff] %vm1805, %v1783
    %1863 = vst.msk [vmem:[%s2 + $0x1c8] sm:$0xff] %vm1805, %v1786
    %1864 = vst.msk [vmem:[%s2 + $0x1d0] sm:$0xff] %vm1805, %v1789
    %1865 = vst.msk [vmem:[%s2 + $0x1d8] sm:$0xff] %vm1805, %v1792
    %1866 = vst.msk [vmem:[%s2 + $0x1e0] sm:$0xff] %vm1805, %v1795
    %1867 = vst.msk [vmem:[%s2 + $0x1e8] sm:$0xff] %vm1805, %v1798
    %1868 = vst.msk [vmem:[%s2 + $0x1f0] sm:$0xff] %vm1805, %v1801
    %1869 = vst.msk [vmem:[%s2 + $0x1f8] sm:$0xff] %vm1805, %v1804
  $region17: #{tpu_custom_call.1} parent=0 // pred_fallthru
    _
  // Predicated region
  $region18: #{tpu_custom_call.1} parent=0 // pred_check
    _
  $region19: #{tpu_custom_call.1} parent=0 // pred_check_branch
    %1871 = sbr.rel (0) target = $region21
  $region20: #{tpu_custom_call.1} parent=0 // pred_region
    _
  $region21: #{tpu_custom_call.1} parent=0 // pred_fallthru
    _
  // Predicated region
  $region22: #{tpu_custom_call.1} parent=0 // pred_check
    _
  $region23: #{tpu_custom_call.1} parent=0 // pred_check_branch
    %1873 = sbr.rel (0) target = $region25
  $region24: #{tpu_custom_call.1} parent=0 // pred_region
    _
  $region25: #{tpu_custom_call.1} parent=0 // pred_fallthru
    _

</llo_original>
